<compile_context>
chip_gen: v6e
topology: v6e:2x2x1
jax: 0.10.0
libtpu: 0.0.40
codegen_flags: <defaults>
</compile_context>

<pallas_src>
import jax
import jax.numpy as jnp
from jax.experimental import pallas as pl
from jax.experimental.pallas import tpu as pltpu

# ---------------- configuration (small, ratio-faithful channel counts) ------------------
PATCH = 4          # stem downsample factor (real resnet50 reid: /16)
K_PAD = 128        # stem input channels (PATCH*PATCH*3 = 48) zero-padded to a full lane tile
C_STEM = 128
C_MAP = 128        # stands in for layer3's 1024 channels
C_FEAT = 256       # stands in for layer4's 2048 channels (LocAtten in_channel)
C_TOT = C_MAP + 2 * C_FEAT


# ---------------- fused Pallas kernel ----------------------------------------------------
def _fused_kernel(x_ref, sw_ref, sb_ref, w3_ref, b3_ref, w4_ref, b4_ref,
                  aw_ref, ab_ref, featatt_ref, pooled_ref):
    """Per (branch, sample): full stem->l3->l4->gate chain + avg-pool epilogue.

    x_ref      : (1, 1, HW, K_PAD)   bf16  patchified image rows of one sample
    *_w / *_b  : branch-selected weights (bf16) / biases (f32), VMEM-resident
    featatt_ref: (1, 1, HW, 2*C_FEAT) bf16  [feat | atten] side by side
    pooled_ref : (1, N, C_TOT)       f32   revisited block; row i = per-sample means of
                                           [map | feat | atten]
    """
    i = pl.program_id(1)
    x = x_ref[0, 0]                                                   # (HW, K_PAD) bf16

    # stem (patchify conv stand-in), f32 accumulate
    h = jnp.dot(x, sw_ref[0], preferred_element_type=jnp.float32)
    h = jnp.maximum(h + sb_ref[0], 0.0)                               # (HW, C_STEM)

    # ~layer3 (1x1 conv)
    fmap = jnp.dot(h.astype(jnp.bfloat16), w3_ref[0],
                   preferred_element_type=jnp.float32)
    fmap = jnp.maximum(fmap + b3_ref[0], 0.0)                         # (HW, C_MAP)

    # ~layer4 (1x1 conv)
    feat = jnp.dot(fmap.astype(jnp.bfloat16), w4_ref[0],
                   preferred_element_type=jnp.float32)
    feat = jnp.maximum(feat + b4_ref[0], 0.0)                         # (HW, C_FEAT)

    # LocAtten stand-in: atten = feat * sigmoid(conv1x1(feat))  (f32 elementwise math)
    gate = jnp.dot(feat.astype(jnp.bfloat16), aw_ref[0],
                   preferred_element_type=jnp.float32)
    atten = feat * jax.nn.sigmoid(gate + ab_ref[0])                   # (HW, C_FEAT)

    # fused [feat | atten] output slab: one lane-dense 512-wide store
    featatt_ref[0, 0] = jnp.concatenate([feat, atten], axis=1).astype(featatt_ref.dtype)

    # pooling epilogue: per-sample spatial means, one full 640-lane row into the
    # VMEM-resident pooled block (written back to HBM once per branch).
    pooled_row = jnp.concatenate(
        [jnp.mean(fmap, axis=0, keepdims=True),
         jnp.mean(feat, axis=0, keepdims=True),
         jnp.mean(atten, axis=0, keepdims=True)], axis=1)             # (1, C_TOT) f32
    pooled_ref[0, pl.ds(i, 1), :] = pooled_row


def fused_forward(patches, prm):
    """patches: (2, N, HW, K_PAD) bf16  (branch 0 = rgb, branch 1 = ir)."""
    B2, N, HW, Kp = patches.shape
    assert B2 == 2 and Kp == K_PAD and HW % 8 == 0

    featatt, pooled = pl.pallas_call(
        _fused_kernel,
        out_shape=(
            jax.ShapeDtypeStruct((B2, N, HW, 2 * C_FEAT), jnp.bfloat16),
            jax.ShapeDtypeStruct((B2, N, C_TOT), jnp.float32),
        ),
        grid=(B2, N),
        in_specs=[
            pl.BlockSpec((1, 1, HW, K_PAD), lambda b, i: (b, i, 0, 0)),   # patches
            pl.BlockSpec((1, K_PAD, C_STEM), lambda b, i: (b, 0, 0)),     # stem_w
            pl.BlockSpec((1, 1, C_STEM), lambda b, i: (b, 0, 0)),         # stem_b
            pl.BlockSpec((1, C_STEM, C_MAP), lambda b, i: (b, 0, 0)),     # l3_w
            pl.BlockSpec((1, 1, C_MAP), lambda b, i: (b, 0, 0)),          # l3_b
            pl.BlockSpec((1, C_MAP, C_FEAT), lambda b, i: (b, 0, 0)),     # l4_w
            pl.BlockSpec((1, 1, C_FEAT), lambda b, i: (b, 0, 0)),         # l4_b
            pl.BlockSpec((1, C_FEAT, C_FEAT), lambda b, i: (b, 0, 0)),    # att_w
            pl.BlockSpec((1, 1, C_FEAT), lambda b, i: (b, 0, 0)),         # att_b
        ],
        out_specs=(
            pl.BlockSpec((1, 1, HW, 2 * C_FEAT), lambda b, i: (b, i, 0, 0)),
            pl.BlockSpec((1, N, C_TOT), lambda b, i: (b, 0, 0)),          # revisited over i
        ),
        compiler_params=pltpu.CompilerParams(
            dimension_semantics=("parallel", "arbitrary")),
    )(patches, prm["stem_w"], prm["stem_b"], prm["l3_w"], prm["l3_b"],
      prm["l4_w"], prm["l4_b"], prm["att_w"], prm["att_b"])
    return featatt, pooled


# ---------------- module glue -------------------------------------------------------------
def _prep_patches(img_nchw):
    """NCHW image -> (N, h*w, K_PAD) bf16 rows (non-overlapping patches, zero-padded K)."""
    N, C, H, W = img_nchw.shape
    assert H % PATCH == 0 and W % PATCH == 0
    p = PATCH
    x = jnp.transpose(img_nchw, (0, 2, 3, 1))                    # NHWC
    x = x.reshape(N, H // p, p, W // p, p, C)
    x = jnp.transpose(x, (0, 1, 3, 2, 4, 5))                     # N, h, w, p, p, C
    x = x.reshape(N, (H // p) * (W // p), p * p * C)
    x = jnp.pad(x, ((0, 0), (0, 0), (0, K_PAD - p * p * C)))     # zero-pad K -> 128 lanes
    return x.astype(jnp.bfloat16)


def feat_extractor_forward(rgb_img, ir_img, params):
    N, _, H, W = rgb_img.shape
    h, w = H // PATCH, W // PATCH

    # one launch for both branches: stack rgb / ir along a leading branch axis
    patches = jnp.stack([_prep_patches(rgb_img), _prep_patches(ir_img)], axis=0)
    featatt, pooled = fused_forward(patches, params)             # (2,N,HW,512), (2,N,640)

    # aligned_feat = avgpool(rgb_atten, 1) - avgpool(ir_atten, 1)
    att_lo = C_MAP + C_FEAT
    aligned_feat = (pooled[0, :, att_lo:] - pooled[1, :, att_lo:]).reshape(N, C_FEAT, 1, 1)

    # map = avgpool(cat_batch(cat_ch(map, feat, atten)_rgb, ..._ir), 1).squeeze()
    # (mean of a channel-concat == concat of means, so the pooled rows from the kernel are it)
    map_pooled = pooled.reshape(2 * N, C_TOT)

    # rgb_feat / ir_feat = cat(feat, atten) channelwise; transpose to NCHW only at the end.
    def to_nchw(fa):
        return jnp.transpose(fa.reshape(N, h, w, 2 * C_FEAT), (0, 3, 1, 2))

    rgb_feat_out = to_nchw(featatt[0])
    ir_feat_out = to_nchw(featatt[1])
    return aligned_feat, map_pooled, rgb_feat_out, ir_feat_out


# ---------------- deterministic parameter init (rgb/ir stacked on axis 0) -----------------
def init_params(seed=0):
    keys = jax.random.split(jax.random.PRNGKey(seed), 8)
    k_in = PATCH * PATCH * 3

    def linear(key, cin, cout, pad_to=None):
        w = jax.random.normal(key, (cin, cout), jnp.float32) * (1.0 / jnp.sqrt(cin))
        if pad_to is not None and pad_to > cin:
            w = jnp.pad(w, ((0, pad_to - cin), (0, 0)))          # zero rows: numerics identical
        b = jnp.zeros((1, cout), jnp.float32)
        return w.astype(jnp.bfloat16), b                         # bf16 weights, f32 bias

    names = ["stem_w", "stem_b", "l3_w", "l3_b", "l4_w", "l4_b", "att_w", "att_b"]

    def branch(ks):
        vals = [*linear(ks[0], k_in, C_STEM, pad_to=K_PAD),
                *linear(ks[1], C_STEM, C_MAP),
                *linear(ks[2], C_MAP, C_FEAT),
                *linear(ks[3], C_FEAT, C_FEAT)]
        return dict(zip(names, vals))

    rgb, ir = branch(keys[:4]), branch(keys[4:])
    return {k: jnp.stack([rgb[k], ir[k]], axis=0) for k in names}


# ---------------- main ---------------------------------------------------------------------
if __name__ == "__main__":
    key = jax.random.PRNGKey(0)
    k_rgb, k_ir = jax.random.split(key)
    rgb_img = jax.random.normal(k_rgb, (2, 3, 32, 32), jnp.float32)   # NCHW
    ir_img = jax.random.normal(k_ir, (2, 3, 32, 32), jnp.float32)     # NCHW

    params = init_params(seed=0)

    outs = jax.jit(feat_extractor_forward)(rgb_img, ir_img, params)
    outs = jax.block_until_ready(outs)

    aligned_feat, map_pooled, rgb_feat, ir_feat = outs
    assert aligned_feat.shape == (2, C_FEAT, 1, 1)
    assert map_pooled.shape == (4, C_MAP + 2 * C_FEAT)
    assert rgb_feat.shape == (2, 2 * C_FEAT, 8, 8)
    assert ir_feat.shape == (2, 2 * C_FEAT, 8, 8)
    assert bool(jnp.all(jnp.isfinite(map_pooled)))
    print("KERNEL_OK")
</pallas_src>

<mosaic_0001>
module attributes {stable_mosaic.version = 11 : i64} {
  func.func @_fused_kernel(%arg0: i32, %arg1: i32, %arg2: memref<1x1x64x128xbf16, #tpu.memory_space<vmem>>, %arg3: memref<1x128x128xbf16, #tpu.memory_space<vmem>>, %arg4: memref<1x1x128xf32, #tpu.memory_space<vmem>>, %arg5: memref<1x128x128xbf16, #tpu.memory_space<vmem>>, %arg6: memref<1x1x128xf32, #tpu.memory_space<vmem>>, %arg7: memref<1x128x256xbf16, #tpu.memory_space<vmem>>, %arg8: memref<1x1x256xf32, #tpu.memory_space<vmem>>, %arg9: memref<1x256x256xbf16, #tpu.memory_space<vmem>>, %arg10: memref<1x1x256xf32, #tpu.memory_space<vmem>>, %arg11: memref<1x1x64x512xbf16, #tpu.memory_space<vmem>>, %arg12: memref<1x2x640xf32, #tpu.memory_space<vmem>>) attributes {dimension_semantics = [#tpu.dimension_semantics<parallel>, #tpu.dimension_semantics<arbitrary>], iteration_bounds = array<i64: 2, 2>, scalar_prefetch = 0 : i64, scratch_operands = 0 : i64, tpu.core_type = #tpu.core_type<tc>, window_params = [{transform_indices = @transform_0, window_bounds = array<i64: 1, 1, 64, 128>}, {transform_indices = @transform_1, window_bounds = array<i64: 1, 128, 128>}, {transform_indices = @transform_2, window_bounds = array<i64: 1, 1, 128>}, {transform_indices = @transform_3, window_bounds = array<i64: 1, 128, 128>}, {transform_indices = @transform_4, window_bounds = array<i64: 1, 1, 128>}, {transform_indices = @transform_5, window_bounds = array<i64: 1, 128, 256>}, {transform_indices = @transform_6, window_bounds = array<i64: 1, 1, 256>}, {transform_indices = @transform_7, window_bounds = array<i64: 1, 256, 256>}, {transform_indices = @transform_8, window_bounds = array<i64: 1, 1, 256>}, {transform_indices = @transform_9, window_bounds = array<i64: 1, 1, 64, 512>}, {transform_indices = @transform_10, window_bounds = array<i64: 1, 2, 640>}]} {
    %c0 = arith.constant 0 : index
    %c0_0 = arith.constant 0 : index
    %c0_1 = arith.constant 0 : index
    %c0_2 = arith.constant 0 : index
    %0 = vector.load %arg2[%c0, %c0_0, %c0_1, %c0_2] : memref<1x1x64x128xbf16, #tpu.memory_space<vmem>>, vector<1x1x64x128xbf16>
    %1 = vector.shape_cast %0 : vector<1x1x64x128xbf16> to vector<64x128xbf16>
    %c0_3 = arith.constant 0 : index
    %c0_4 = arith.constant 0 : index
    %c0_5 = arith.constant 0 : index
    %2 = vector.load %arg3[%c0_3, %c0_4, %c0_5] : memref<1x128x128xbf16, #tpu.memory_space<vmem>>, vector<1x128x128xbf16>
    %3 = vector.shape_cast %2 : vector<1x128x128xbf16> to vector<128x128xbf16>
    %cst = arith.constant dense<0.000000e+00> : vector<64x128xf32>
    %4 = tpu.matmul %1, %3, %cst {dimension_numbers = #tpu.dot_dimension_numbers<[1], [0], [0], [1], [0, 0, 1, 1], [], []>} : vector<64x128xbf16>, vector<128x128xbf16>, vector<64x128xf32> -> vector<64x128xf32>
    %c0_6 = arith.constant 0 : index
    %c0_7 = arith.constant 0 : index
    %c0_8 = arith.constant 0 : index
    %5 = vector.load %arg4[%c0_6, %c0_7, %c0_8] : memref<1x1x128xf32, #tpu.memory_space<vmem>>, vector<1x1x128xf32>
    %6 = vector.shape_cast %5 : vector<1x1x128xf32> to vector<1x128xf32>
    %7 = vector.broadcast %6 : vector<1x128xf32> to vector<64x128xf32>
    %8 = arith.addf %4, %7 : vector<64x128xf32>
    %cst_9 = arith.constant 0.000000e+00 : f32
    %9 = vector.broadcast %cst_9 : f32 to vector<64x128xf32>
    %10 = arith.maximumf %8, %9 : vector<64x128xf32>
    %11 = arith.truncf %10 : vector<64x128xf32> to vector<64x128xbf16>
    %c0_10 = arith.constant 0 : index
    %c0_11 = arith.constant 0 : index
    %c0_12 = arith.constant 0 : index
    %12 = vector.load %arg5[%c0_10, %c0_11, %c0_12] : memref<1x128x128xbf16, #tpu.memory_space<vmem>>, vector<1x128x128xbf16>
    %13 = vector.shape_cast %12 : vector<1x128x128xbf16> to vector<128x128xbf16>
    %cst_13 = arith.constant dense<0.000000e+00> : vector<64x128xf32>
    %14 = tpu.matmul %11, %13, %cst_13 {dimension_numbers = #tpu.dot_dimension_numbers<[1], [0], [0], [1], [0, 0, 1, 1], [], []>} : vector<64x128xbf16>, vector<128x128xbf16>, vector<64x128xf32> -> vector<64x128xf32>
    %c0_14 = arith.constant 0 : index
    %c0_15 = arith.constant 0 : index
    %c0_16 = arith.constant 0 : index
    %15 = vector.load %arg6[%c0_14, %c0_15, %c0_16] : memref<1x1x128xf32, #tpu.memory_space<vmem>>, vector<1x1x128xf32>
    %16 = vector.shape_cast %15 : vector<1x1x128xf32> to vector<1x128xf32>
    %17 = vector.broadcast %16 : vector<1x128xf32> to vector<64x128xf32>
    %18 = arith.addf %14, %17 : vector<64x128xf32>
    %cst_17 = arith.constant 0.000000e+00 : f32
    %19 = vector.broadcast %cst_17 : f32 to vector<64x128xf32>
    %20 = arith.maximumf %18, %19 : vector<64x128xf32>
    %21 = arith.truncf %20 : vector<64x128xf32> to vector<64x128xbf16>
    %c0_18 = arith.constant 0 : index
    %c0_19 = arith.constant 0 : index
    %c0_20 = arith.constant 0 : index
    %22 = vector.load %arg7[%c0_18, %c0_19, %c0_20] : memref<1x128x256xbf16, #tpu.memory_space<vmem>>, vector<1x128x256xbf16>
    %23 = vector.shape_cast %22 : vector<1x128x256xbf16> to vector<128x256xbf16>
    %cst_21 = arith.constant dense<0.000000e+00> : vector<64x256xf32>
    %24 = tpu.matmul %21, %23, %cst_21 {dimension_numbers = #tpu.dot_dimension_numbers<[1], [0], [0], [1], [0, 0, 1, 1], [], []>} : vector<64x128xbf16>, vector<128x256xbf16>, vector<64x256xf32> -> vector<64x256xf32>
    %c0_22 = arith.constant 0 : index
    %c0_23 = arith.constant 0 : index
    %c0_24 = arith.constant 0 : index
    %25 = vector.load %arg8[%c0_22, %c0_23, %c0_24] : memref<1x1x256xf32, #tpu.memory_space<vmem>>, vector<1x1x256xf32>
    %26 = vector.shape_cast %25 : vector<1x1x256xf32> to vector<1x256xf32>
    %27 = vector.broadcast %26 : vector<1x256xf32> to vector<64x256xf32>
    %28 = arith.addf %24, %27 : vector<64x256xf32>
    %cst_25 = arith.constant 0.000000e+00 : f32
    %29 = vector.broadcast %cst_25 : f32 to vector<64x256xf32>
    %30 = arith.maximumf %28, %29 : vector<64x256xf32>
    %31 = arith.truncf %30 : vector<64x256xf32> to vector<64x256xbf16>
    %c0_26 = arith.constant 0 : index
    %c0_27 = arith.constant 0 : index
    %c0_28 = arith.constant 0 : index
    %32 = vector.load %arg9[%c0_26, %c0_27, %c0_28] : memref<1x256x256xbf16, #tpu.memory_space<vmem>>, vector<1x256x256xbf16>
    %33 = vector.shape_cast %32 : vector<1x256x256xbf16> to vector<256x256xbf16>
    %cst_29 = arith.constant dense<0.000000e+00> : vector<64x256xf32>
    %34 = tpu.matmul %31, %33, %cst_29 {dimension_numbers = #tpu.dot_dimension_numbers<[1], [0], [0], [1], [0, 0, 1, 1], [], []>} : vector<64x256xbf16>, vector<256x256xbf16>, vector<64x256xf32> -> vector<64x256xf32>
    %c0_30 = arith.constant 0 : index
    %c0_31 = arith.constant 0 : index
    %c0_32 = arith.constant 0 : index
    %35 = vector.load %arg10[%c0_30, %c0_31, %c0_32] : memref<1x1x256xf32, #tpu.memory_space<vmem>>, vector<1x1x256xf32>
    %36 = vector.shape_cast %35 : vector<1x1x256xf32> to vector<1x256xf32>
    %37 = vector.broadcast %36 : vector<1x256xf32> to vector<64x256xf32>
    %38 = arith.addf %34, %37 : vector<64x256xf32>
    %39 = arith.negf %38 : vector<64x256xf32>
    %40 = math.exp %39 : vector<64x256xf32>
    %cst_33 = arith.constant 1.000000e+00 : f32
    %41 = vector.broadcast %cst_33 : f32 to vector<64x256xf32>
    %42 = arith.addf %41, %40 : vector<64x256xf32>
    %43 = arith.divf %41, %42 : vector<64x256xf32>
    %44 = arith.mulf %30, %43 : vector<64x256xf32>
    %45 = tpu.concatenate %30, %44 in 1 : vector<64x256xf32>, vector<64x256xf32> -> vector<64x512xf32>
    %46 = arith.truncf %45 : vector<64x512xf32> to vector<64x512xbf16>
    %c0_34 = arith.constant 0 : index
    %c0_35 = arith.constant 0 : index
    %c0_36 = arith.constant 0 : index
    %c0_37 = arith.constant 0 : index
    %47 = vector.load %arg11[%c0_34, %c0_35, %c0_36, %c0_37] : memref<1x1x64x512xbf16, #tpu.memory_space<vmem>>, vector<1x1x64x512xbf16>
    %48 = vector.shape_cast %47 : vector<1x1x64x512xbf16> to vector<64x512xbf16>
    %49 = vector.shape_cast %46 : vector<64x512xbf16> to vector<1x1x64x512xbf16>
    tpu.vector_store %arg11[%c0_34, %c0_35, %c0_36, %c0_37], %49 {strides = array<i32>} : memref<1x1x64x512xbf16, #tpu.memory_space<vmem>>, vector<1x1x64x512xbf16>,
    %cst_38 = arith.constant dense<0.000000e+00> : vector<128xf32>
    %50 = vector.multi_reduction <add>, %20, %cst_38 [0] : vector<64x128xf32> to vector<128xf32>
    %51 = vector.shape_cast %50 : vector<128xf32> to vector<1x128xf32>
    %cst_39 = arith.constant 6.400000e+01 : f32
    %52 = vector.broadcast %cst_39 : f32 to vector<1x128xf32>
    %53 = arith.divf %51, %52 : vector<1x128xf32>
    %cst_40 = arith.constant dense<0.000000e+00> : vector<256xf32>
    %54 = vector.multi_reduction <add>, %30, %cst_40 [0] : vector<64x256xf32> to vector<256xf32>
    %55 = vector.shape_cast %54 : vector<256xf32> to vector<1x256xf32>
    %cst_41 = arith.constant 6.400000e+01 : f32
    %56 = vector.broadcast %cst_41 : f32 to vector<1x256xf32>
    %57 = arith.divf %55, %56 : vector<1x256xf32>
    %cst_42 = arith.constant dense<0.000000e+00> : vector<256xf32>
    %58 = vector.multi_reduction <add>, %44, %cst_42 [0] : vector<64x256xf32> to vector<256xf32>
    %59 = vector.shape_cast %58 : vector<256xf32> to vector<1x256xf32>
    %cst_43 = arith.constant 6.400000e+01 : f32
    %60 = vector.broadcast %cst_43 : f32 to vector<1x256xf32>
    %61 = arith.divf %59, %60 : vector<1x256xf32>
    %62 = tpu.concatenate %53, %57, %61 in 1 : vector<1x128xf32>, vector<1x256xf32>, vector<1x256xf32> -> vector<1x640xf32>
    %c0_44 = arith.constant 0 : index
    %63 = arith.index_cast %arg1 : i32 to index
    %c0_45 = arith.constant 0 : index
    %64 = vector.load %arg12[%c0_44, %63, %c0_45] : memref<1x2x640xf32, #tpu.memory_space<vmem>>, vector<1x1x640xf32>
    %65 = vector.shape_cast %64 : vector<1x1x640xf32> to vector<1x640xf32>
    %66 = vector.shape_cast %62 : vector<1x640xf32> to vector<1x1x640xf32>
    tpu.vector_store %arg12[%c0_44, %63, %c0_45], %66 {strides = array<i32>} : memref<1x2x640xf32, #tpu.memory_space<vmem>>, vector<1x1x640xf32>,
    return
  }
  func.func @transform_0(%arg0: i32, %arg1: i32) -> (i32, i32, i32, i32) {
    %c0_i32 = arith.constant 0 : i32
    %c0_i32_0 = arith.constant 0 : i32
    %c0_i32_1 = arith.constant 0 : i32
    return %arg0, %arg1, %c0_i32, %c0_i32_0 : i32, i32, i32, i32
  }
  func.func @transform_1(%arg0: i32, %arg1: i32) -> (i32, i32, i32) {
    %c0_i32 = arith.constant 0 : i32
    %c0_i32_0 = arith.constant 0 : i32
    %c0_i32_1 = arith.constant 0 : i32
    return %arg0, %c0_i32, %c0_i32_0 : i32, i32, i32
  }
  func.func @transform_2(%arg0: i32, %arg1: i32) -> (i32, i32, i32) {
    %c0_i32 = arith.constant 0 : i32
    %c0_i32_0 = arith.constant 0 : i32
    %c0_i32_1 = arith.constant 0 : i32
    return %arg0, %c0_i32, %c0_i32_0 : i32, i32, i32
  }
  func.func @transform_3(%arg0: i32, %arg1: i32) -> (i32, i32, i32) {
    %c0_i32 = arith.constant 0 : i32
    %c0_i32_0 = arith.constant 0 : i32
    %c0_i32_1 = arith.constant 0 : i32
    return %arg0, %c0_i32, %c0_i32_0 : i32, i32, i32
  }
  func.func @transform_4(%arg0: i32, %arg1: i32) -> (i32, i32, i32) {
    %c0_i32 = arith.constant 0 : i32
    %c0_i32_0 = arith.constant 0 : i32
    %c0_i32_1 = arith.constant 0 : i32
    return %arg0, %c0_i32, %c0_i32_0 : i32, i32, i32
  }
  func.func @transform_5(%arg0: i32, %arg1: i32) -> (i32, i32, i32) {
    %c0_i32 = arith.constant 0 : i32
    %c0_i32_0 = arith.constant 0 : i32
    %c0_i32_1 = arith.constant 0 : i32
    return %arg0, %c0_i32, %c0_i32_0 : i32, i32, i32
  }
  func.func @transform_6(%arg0: i32, %arg1: i32) -> (i32, i32, i32) {
    %c0_i32 = arith.constant 0 : i32
    %c0_i32_0 = arith.constant 0 : i32
    %c0_i32_1 = arith.constant 0 : i32
    return %arg0, %c0_i32, %c0_i32_0 : i32, i32, i32
  }
  func.func @transform_7(%arg0: i32, %arg1: i32) -> (i32, i32, i32) {
    %c0_i32 = arith.constant 0 : i32
    %c0_i32_0 = arith.constant 0 : i32
    %c0_i32_1 = arith.constant 0 : i32
    return %arg0, %c0_i32, %c0_i32_0 : i32, i32, i32
  }
  func.func @transform_8(%arg0: i32, %arg1: i32) -> (i32, i32, i32) {
    %c0_i32 = arith.constant 0 : i32
    %c0_i32_0 = arith.constant 0 : i32
    %c0_i32_1 = arith.constant 0 : i32
    return %arg0, %c0_i32, %c0_i32_0 : i32, i32, i32
  }
  func.func @transform_9(%arg0: i32, %arg1: i32) -> (i32, i32, i32, i32) {
    %c0_i32 = arith.constant 0 : i32
    %c0_i32_0 = arith.constant 0 : i32
    %c0_i32_1 = arith.constant 0 : i32
    return %arg0, %arg1, %c0_i32, %c0_i32_0 : i32, i32, i32, i32
  }
  func.func @transform_10(%arg0: i32, %arg1: i32) -> (i32, i32, i32) {
    %c0_i32 = arith.constant 0 : i32
    %c0_i32_0 = arith.constant 0 : i32
    %c0_i32_1 = arith.constant 0 : i32
    return %arg0, %c0_i32, %c0_i32_0 : i32, i32, i32
  }
}

</mosaic_0001>

<llo_original>
// kernel: feat_extractor_forward.1
$region0: #{feat_extractor_forward.1}
  #allocation0 [shape = 'u32[]', space=smem, size = 0x4, offset = 0x4, fixed_abs, tag = 'smem constant byte address 0x4 - core index']
  #allocation1 [shape = 'u32[144,128]{1,0:T(1,128)}', space=vmem, size = 0x12000, scoped, tag = 'internal scratch']
  %s0 = inlined_call_operand.vmem [shape: bf16[2,2,64,128], index: 0, kind: input, shape index: {}]
  %s1 = inlined_call_operand.vmem [shape: bf16[2,128,128], index: 1, kind: input, shape index: {}]
  %s2 = inlined_call_operand.vmem [shape: f32[2,1,128], index: 2, kind: input, shape index: {}]
  %s3 = inlined_call_operand.vmem [shape: bf16[2,128,128], index: 3, kind: input, shape index: {}]
  %s4 = inlined_call_operand.vmem [shape: f32[2,1,128], index: 4, kind: input, shape index: {}]
  %s5 = inlined_call_operand.vmem [shape: bf16[2,128,256], index: 5, kind: input, shape index: {}]
  %s6 = inlined_call_operand.vmem [shape: f32[2,1,256], index: 6, kind: input, shape index: {}]
  %s7 = inlined_call_operand.vmem [shape: bf16[2,256,256], index: 7, kind: input, shape index: {}]
  %s8 = inlined_call_operand.vmem [shape: f32[2,1,256], index: 8, kind: input, shape index: {}]
  %s9 = inlined_call_operand.vmem [shape: bf16[2,2,64,512], index: 9, kind: output, shape index: {0}]
  %s10 = inlined_call_operand.vmem [shape: f32[2,2,640], index: 10, kind: output, shape index: {1}]
  %11 = xla_tuple %s9, %s10
  %s12 = sld [smem:[#allocation0]]
  $region77: #{feat_extractor_forward.1} parent=0
    _
  %s14 = ssub.s32 1, %s12
  %s15 = scalar_select 0, %s14, %s12
  loop: start=0, step=1, limit=6
  $region2: #{feat_extractor_forward.1} parent=0 // loop_pre_header
    _
  $region3: #{feat_extractor_forward.1} parent=0 // loop_header
    %s17 = sphi 0, %s21
    %p18 = scmp.ge.s32.totalorder %s17, 6
    %s24 = sphi 0, %s36
    %s25 = sphi 0, %s32
    %s26 = sphi 0, %s24
    %s27 = sphi 0, %s25
    %s28 = sphi 0, %s26
    %s29 = sphi 0, %s27
    %s41 = sphi 0, %s43
    %s44 = sphi 0, %s41
    %s45 = sphi 0, %s44
    %s61 = sphi 0, %s45
    %s67 = sphi 0, %s69
    %s70 = sphi 0, %s67
    %s71 = sphi 0, %s70
    %s87 = sphi 0, %s71
    %s93 = sphi 0, %s95
    %s96 = sphi 0, %s93
    %s97 = sphi 0, %s96
    %s113 = sphi 0, %s97
    %s119 = sphi 0, %s121
    %s122 = sphi 0, %s119
    %s123 = sphi 0, %s122
    %s139 = sphi 0, %s123
    %s145 = sphi 0, %s147
    %s148 = sphi 0, %s145
    %s149 = sphi 0, %s148
    %s165 = sphi 0, %s149
    %s171 = sphi 0, %s173
    %s174 = sphi 0, %s171
    %s175 = sphi 0, %s174
    %s191 = sphi 0, %s175
    %s197 = sphi 0, %s199
    %s200 = sphi 0, %s197
    %s201 = sphi 0, %s200
    %s217 = sphi 0, %s201
    %s223 = sphi 0, %s225
    %s226 = sphi 0, %s223
    %s227 = sphi 0, %s226
    %s243 = sphi 0, %s227
    %s249 = sphi 0, %s251
    %s252 = sphi 0, %s249
    %s253 = sphi 0, %s252
    %s269 = sphi 0, %s253
    %s277 = sphi 0, %s279
    %s280 = sphi 0, %s277
    %s281 = sphi 0, %s280
    %s297 = sphi 0, %s281
    %s303 = sphi 0, %s305
    %s306 = sphi 0, %s303
    %s307 = sphi 0, %s306
    %s323 = sphi 0, %s307
  $region4: #{feat_extractor_forward.1} parent=0 // loop_header_branch
    %20 = sbr.rel (%p18) target = $region8
  $region5: #{feat_extractor_forward.1} parent=0 // loop_body
    %s22 = ssub.s32 %s17, 1
    %s23 = ssub.s32 %s17, 2
    %s30 = sadd.s32 1, %s25
    %p31 = scmp.ge.s32.totalorder %s30, 2
    %s32 = scalar_select %p31, 0, %s30
    %s33 = sadd.s32 1, %s24
    %s34 = scalar_select %p31, %s33, %s24
    %p35 = scmp.ge.s32.totalorder %s34, 2
    %s36 = scalar_select %p35, 0, %s34
    %s37 = ssub.s32 %s24, %s36
    %s38 = ssub.s32 %s25, %s32
    %s39 = sor.u32 %s37, %s38
    %p40 = scmp.eq.s32.totalorder %s39, 0
    %s42 = sadd.s32 %s41, 1
    %s43 = scalar_select %p40, %s41, %s42
    %p46 = pneg %p40
    %p47 = scmp.eq.s32.totalorder %s17, 3
    %p48 = por %p46, %p47
    %p49 = scmp.ne.s32.totalorder %s41, %s44
    %p50 = scmp.eq.s32.totalorder %s17, 0
    %p51 = por %p49, %p50
    %p52 = scmp.ne.s32.totalorder %s41, %s44
    %p53 = scmp.eq.s32.totalorder %s22, 3
    %p54 = por %p52, %p53
    %p55 = scmp.ne.s32.totalorder %s44, %s45
    %p56 = scmp.eq.s32.totalorder %s22, 0
    %p57 = por %p55, %p56
    %p58 = scmp.ne.s32.totalorder %s44, %s45
    %p59 = scmp.eq.s32.totalorder %s23, 3
    %p60 = por %p58, %p59
    %p62 = scmp.ne.s32.totalorder %s45, %s61
    %p63 = scmp.eq.s32.totalorder %s23, 0
    %p64 = por %p62, %p63
    %s65 = ssub.s32 %s24, %s36
    %p66 = scmp.eq.s32.totalorder %s65, 0
    %s68 = sadd.s32 %s67, 1
    %s69 = scalar_select %p66, %s67, %s68
    %p72 = pneg %p66
    %p73 = scmp.eq.s32.totalorder %s17, 3
    %p74 = por %p72, %p73
    %p75 = scmp.ne.s32.totalorder %s67, %s70
    %p76 = scmp.eq.s32.totalorder %s17, 0
    %p77 = por %p75, %p76
    %p78 = scmp.ne.s32.totalorder %s67, %s70
    %p79 = scmp.eq.s32.totalorder %s22, 3
    %p80 = por %p78, %p79
    %p81 = scmp.ne.s32.totalorder %s70, %s71
    %p82 = scmp.eq.s32.totalorder %s22, 0
    %p83 = por %p81, %p82
    %p84 = scmp.ne.s32.totalorder %s70, %s71
    %p85 = scmp.eq.s32.totalorder %s23, 3
    %p86 = por %p84, %p85
    %p88 = scmp.ne.s32.totalorder %s71, %s87
    %p89 = scmp.eq.s32.totalorder %s23, 0
    %p90 = por %p88, %p89
    %s91 = ssub.s32 %s24, %s36
    %p92 = scmp.eq.s32.totalorder %s91, 0
    %s94 = sadd.s32 %s93, 1
    %s95 = scalar_select %p92, %s93, %s94
    %p98 = pneg %p92
    %p99 = scmp.eq.s32.totalorder %s17, 3
    %p100 = por %p98, %p99
    %p101 = scmp.ne.s32.totalorder %s93, %s96
    %p102 = scmp.eq.s32.totalorder %s17, 0
    %p103 = por %p101, %p102
    %p104 = scmp.ne.s32.totalorder %s93, %s96
    %p105 = scmp.eq.s32.totalorder %s22, 3
    %p106 = por %p104, %p105
    %p107 = scmp.ne.s32.totalorder %s96, %s97
    %p108 = scmp.eq.s32.totalorder %s22, 0
    %p109 = por %p107, %p108
    %p110 = scmp.ne.s32.totalorder %s96, %s97
    %p111 = scmp.eq.s32.totalorder %s23, 3
    %p112 = por %p110, %p111
    %p114 = scmp.ne.s32.totalorder %s97, %s113
    %p115 = scmp.eq.s32.totalorder %s23, 0
    %p116 = por %p114, %p115
    %s117 = ssub.s32 %s24, %s36
    %p118 = scmp.eq.s32.totalorder %s117, 0
    %s120 = sadd.s32 %s119, 1
    %s121 = scalar_select %p118, %s119, %s120
    %p124 = pneg %p118
    %p125 = scmp.eq.s32.totalorder %s17, 3
    %p126 = por %p124, %p125
    %p127 = scmp.ne.s32.totalorder %s119, %s122
    %p128 = scmp.eq.s32.totalorder %s17, 0
    %p129 = por %p127, %p128
    %p130 = scmp.ne.s32.totalorder %s119, %s122
    %p131 = scmp.eq.s32.totalorder %s22, 3
    %p132 = por %p130, %p131
    %p133 = scmp.ne.s32.totalorder %s122, %s123
    %p134 = scmp.eq.s32.totalorder %s22, 0
    %p135 = por %p133, %p134
    %p136 = scmp.ne.s32.totalorder %s122, %s123
    %p137 = scmp.eq.s32.totalorder %s23, 3
    %p138 = por %p136, %p137
    %p140 = scmp.ne.s32.totalorder %s123, %s139
    %p141 = scmp.eq.s32.totalorder %s23, 0
    %p142 = por %p140, %p141
    %s143 = ssub.s32 %s24, %s36
    %p144 = scmp.eq.s32.totalorder %s143, 0
    %s146 = sadd.s32 %s145, 1
    %s147 = scalar_select %p144, %s145, %s146
    %p150 = pneg %p144
    %p151 = scmp.eq.s32.totalorder %s17, 3
    %p152 = por %p150, %p151
    %p153 = scmp.ne.s32.totalorder %s145, %s148
    %p154 = scmp.eq.s32.totalorder %s17, 0
    %p155 = por %p153, %p154
    %p156 = scmp.ne.s32.totalorder %s145, %s148
    %p157 = scmp.eq.s32.totalorder %s22, 3
    %p158 = por %p156, %p157
    %p159 = scmp.ne.s32.totalorder %s148, %s149
    %p160 = scmp.eq.s32.totalorder %s22, 0
    %p161 = por %p159, %p160
    %p162 = scmp.ne.s32.totalorder %s148, %s149
    %p163 = scmp.eq.s32.totalorder %s23, 3
    %p164 = por %p162, %p163
    %p166 = scmp.ne.s32.totalorder %s149, %s165
    %p167 = scmp.eq.s32.totalorder %s23, 0
    %p168 = por %p166, %p167
    %s169 = ssub.s32 %s24, %s36
    %p170 = scmp.eq.s32.totalorder %s169, 0
    %s172 = sadd.s32 %s171, 1
    %s173 = scalar_select %p170, %s171, %s172
    %p176 = pneg %p170
    %p177 = scmp.eq.s32.totalorder %s17, 3
    %p178 = por %p176, %p177
    %p179 = scmp.ne.s32.totalorder %s171, %s174
    %p180 = scmp.eq.s32.totalorder %s17, 0
    %p181 = por %p179, %p180
    %p182 = scmp.ne.s32.totalorder %s171, %s174
    %p183 = scmp.eq.s32.totalorder %s22, 3
    %p184 = por %p182, %p183
    %p185 = scmp.ne.s32.totalorder %s174, %s175
    %p186 = scmp.eq.s32.totalorder %s22, 0
    %p187 = por %p185, %p186
    %p188 = scmp.ne.s32.totalorder %s174, %s175
    %p189 = scmp.eq.s32.totalorder %s23, 3
    %p190 = por %p188, %p189
    %p192 = scmp.ne.s32.totalorder %s175, %s191
    %p193 = scmp.eq.s32.totalorder %s23, 0
    %p194 = por %p192, %p193
    %s195 = ssub.s32 %s24, %s36
    %p196 = scmp.eq.s32.totalorder %s195, 0
    %s198 = sadd.s32 %s197, 1
    %s199 = scalar_select %p196, %s197, %s198
    %p202 = pneg %p196
    %p203 = scmp.eq.s32.totalorder %s17, 3
    %p204 = por %p202, %p203
    %p205 = scmp.ne.s32.totalorder %s197, %s200
    %p206 = scmp.eq.s32.totalorder %s17, 0
    %p207 = por %p205, %p206
    %p208 = scmp.ne.s32.totalorder %s197, %s200
    %p209 = scmp.eq.s32.totalorder %s22, 3
    %p210 = por %p208, %p209
    %p211 = scmp.ne.s32.totalorder %s200, %s201
    %p212 = scmp.eq.s32.totalorder %s22, 0
    %p213 = por %p211, %p212
    %p214 = scmp.ne.s32.totalorder %s200, %s201
    %p215 = scmp.eq.s32.totalorder %s23, 3
    %p216 = por %p214, %p215
    %p218 = scmp.ne.s32.totalorder %s201, %s217
    %p219 = scmp.eq.s32.totalorder %s23, 0
    %p220 = por %p218, %p219
    %s221 = ssub.s32 %s24, %s36
    %p222 = scmp.eq.s32.totalorder %s221, 0
    %s224 = sadd.s32 %s223, 1
    %s225 = scalar_select %p222, %s223, %s224
    %p228 = pneg %p222
    %p229 = scmp.eq.s32.totalorder %s17, 3
    %p230 = por %p228, %p229
    %p231 = scmp.ne.s32.totalorder %s223, %s226
    %p232 = scmp.eq.s32.totalorder %s17, 0
    %p233 = por %p231, %p232
    %p234 = scmp.ne.s32.totalorder %s223, %s226
    %p235 = scmp.eq.s32.totalorder %s22, 3
    %p236 = por %p234, %p235
    %p237 = scmp.ne.s32.totalorder %s226, %s227
    %p238 = scmp.eq.s32.totalorder %s22, 0
    %p239 = por %p237, %p238
    %p240 = scmp.ne.s32.totalorder %s226, %s227
    %p241 = scmp.eq.s32.totalorder %s23, 3
    %p242 = por %p240, %p241
    %p244 = scmp.ne.s32.totalorder %s227, %s243
    %p245 = scmp.eq.s32.totalorder %s23, 0
    %p246 = por %p244, %p245
    %s247 = ssub.s32 %s24, %s36
    %p248 = scmp.eq.s32.totalorder %s247, 0
    %s250 = sadd.s32 %s249, 1
    %s251 = scalar_select %p248, %s249, %s250
    %p254 = pneg %p248
    %p255 = scmp.eq.s32.totalorder %s17, 3
    %p256 = por %p254, %p255
    %p257 = scmp.ne.s32.totalorder %s249, %s252
    %p258 = scmp.eq.s32.totalorder %s17, 0
    %p259 = por %p257, %p258
    %p260 = scmp.ne.s32.totalorder %s249, %s252
    %p261 = scmp.eq.s32.totalorder %s22, 3
    %p262 = por %p260, %p261
    %p263 = scmp.ne.s32.totalorder %s252, %s253
    %p264 = scmp.eq.s32.totalorder %s22, 0
    %p265 = por %p263, %p264
    %p266 = scmp.ne.s32.totalorder %s252, %s253
    %p267 = scmp.eq.s32.totalorder %s23, 3
    %p268 = por %p266, %p267
    %p270 = scmp.ne.s32.totalorder %s253, %s269
    %p271 = scmp.eq.s32.totalorder %s23, 0
    %p272 = por %p270, %p271
    %s273 = ssub.s32 %s24, %s36
    %s274 = ssub.s32 %s25, %s32
    %s275 = sor.u32 %s273, %s274
    %p276 = scmp.eq.s32.totalorder %s275, 0
    %s278 = sadd.s32 %s277, 1
    %s279 = scalar_select %p276, %s277, %s278
    %p282 = pneg %p276
    %p283 = scmp.eq.s32.totalorder %s17, 3
    %p284 = por %p282, %p283
    %p285 = scmp.ne.s32.totalorder %s277, %s280
    %p286 = scmp.eq.s32.totalorder %s17, 0
    %p287 = por %p285, %p286
    %p288 = scmp.ne.s32.totalorder %s277, %s280
    %p289 = scmp.eq.s32.totalorder %s22, 3
    %p290 = por %p288, %p289
    %p291 = scmp.ne.s32.totalorder %s280, %s281
    %p292 = scmp.eq.s32.totalorder %s22, 0
    %p293 = por %p291, %p292
    %p294 = scmp.ne.s32.totalorder %s280, %s281
    %p295 = scmp.eq.s32.totalorder %s23, 3
    %p296 = por %p294, %p295
    %p298 = scmp.ne.s32.totalorder %s281, %s297
    %p299 = scmp.eq.s32.totalorder %s23, 0
    %p300 = por %p298, %p299
    %s301 = ssub.s32 %s24, %s36
    %p302 = scmp.eq.s32.totalorder %s301, 0
    %s304 = sadd.s32 %s303, 1
    %s305 = scalar_select %p302, %s303, %s304
    %p308 = pneg %p302
    %p309 = scmp.eq.s32.totalorder %s17, 3
    %p310 = por %p308, %p309
    %p311 = scmp.ne.s32.totalorder %s303, %s306
    %p312 = scmp.eq.s32.totalorder %s17, 0
    %p313 = por %p311, %p312
    %p314 = scmp.ne.s32.totalorder %s303, %s306
    %p315 = scmp.eq.s32.totalorder %s22, 3
    %p316 = por %p314, %p315
    %p317 = scmp.ne.s32.totalorder %s306, %s307
    %p318 = scmp.eq.s32.totalorder %s22, 0
    %p319 = por %p317, %p318
    %p320 = scmp.ne.s32.totalorder %s306, %s307
    %p321 = scmp.eq.s32.totalorder %s23, 3
    %p322 = por %p320, %p321
    %p324 = scmp.ne.s32.totalorder %s307, %s323
    %p325 = scmp.eq.s32.totalorder %s23, 0
    %p326 = por %p324, %p325
    %p327 = scmp.le.s32.totalorder 1, %s17
    %p328 = scmp.lt.s32.totalorder %s17, 5
    %p329 = pnand %p327, %p328
    %p330 = pneg %p329
    // Predicated region
    $region9: #{feat_extractor_forward.1} parent=5 // pred_check
      _
    $region10: #{feat_extractor_forward.1} parent=5 // pred_check_branch
      %332 = sbr.rel (%p329) target = $region12
    $region11: #{feat_extractor_forward.1} parent=5 // pred_region
      %s333 = ssub.s32 %s17, 1
    $region12: #{feat_extractor_forward.1} parent=5 // pred_fallthru
      _
    %p334 = scmp.lt.s32.totalorder %s17, 4
    // Predicated region
    $region13: #{feat_extractor_forward.1} parent=5 // pred_check
      %p335 = pneg %p334
    $region14: #{feat_extractor_forward.1} parent=5 // pred_check_branch
      %337 = sbr.rel (%p335) target = $region16
    $region15: #{feat_extractor_forward.1} parent=5 // pred_region
      // Predicated region
      $region17: #{feat_extractor_forward.1} parent=15 // pred_check
        %p338 = pneg %p51
      $region18: #{feat_extractor_forward.1} parent=15 // pred_check_branch
        %340 = sbr.rel (%p338) target = $region20
      $region19: #{feat_extractor_forward.1} parent=15 // pred_region
        %p341 = scmp.lt.s32.totalorder %s24, 1
        %s342 = scalar_select %p341, %s24, 1
        %p343 = scmp.lt.s32.totalorder %s25, 1
        %s344 = scalar_select %p343, %s25, 1
        %s345 = smul.addr %s344, 8
        %s346 = smul.addr %s342, 16
        %s347 = sadd.s32 %s345, %s346
        %s348 = smul.addr %s347, 4
        %s349 = scalar_lea.vmem %s0, %s348
      $region20: #{feat_extractor_forward.1} parent=15 // pred_fallthru
        _
      // Predicated region
      $region21: #{feat_extractor_forward.1} parent=15 // pred_check
        %p350 = pneg %p77
      $region22: #{feat_extractor_forward.1} parent=15 // pred_check_branch
        %352 = sbr.rel (%p350) target = $region24
      $region23: #{feat_extractor_forward.1} parent=15 // pred_region
        %p353 = scmp.lt.s32.totalorder %s24, 1
        %s354 = scalar_select %p353, %s24, 1
        %s355 = smul.addr %s354, 16
        %s356 = smul.addr %s355, 4
        %s357 = scalar_lea.vmem %s1, %s356
      $region24: #{feat_extractor_forward.1} parent=15 // pred_fallthru
        _
      // Predicated region
      $region25: #{feat_extractor_forward.1} parent=15 // pred_check
        %p358 = pneg %p103
      $region26: #{feat_extractor_forward.1} parent=15 // pred_check_branch
        %360 = sbr.rel (%p358) target = $region28
      $region27: #{feat_extractor_forward.1} parent=15 // pred_region
        %p361 = scmp.lt.s32.totalorder %s24, 1
        %s362 = scalar_select %p361, %s24, 1
        %s363 = scalar_lea.vmem %s2, %s362
      $region28: #{feat_extractor_forward.1} parent=15 // pred_fallthru
        _
      // Predicated region
      $region29: #{feat_extractor_forward.1} parent=15 // pred_check
        %p364 = pneg %p129
      $region30: #{feat_extractor_forward.1} parent=15 // pred_check_branch
        %366 = sbr.rel (%p364) target = $region32
      $region31: #{feat_extractor_forward.1} parent=15 // pred_region
        %p367 = scmp.lt.s32.totalorder %s24, 1
        %s368 = scalar_select %p367, %s24, 1
        %s369 = smul.addr %s368, 16
        %s370 = smul.addr %s369, 4
        %s371 = scalar_lea.vmem %s3, %s370
      $region32: #{feat_extractor_forward.1} parent=15 // pred_fallthru
        _
      // Predicated region
      $region33: #{feat_extractor_forward.1} parent=15 // pred_check
        %p372 = pneg %p155
      $region34: #{feat_extractor_forward.1} parent=15 // pred_check_branch
        %374 = sbr.rel (%p372) target = $region36
      $region35: #{feat_extractor_forward.1} parent=15 // pred_region
        %p375 = scmp.lt.s32.totalorder %s24, 1
        %s376 = scalar_select %p375, %s24, 1
        %s377 = scalar_lea.vmem %s4, %s376
      $region36: #{feat_extractor_forward.1} parent=15 // pred_fallthru
        _
      // Predicated region
      $region37: #{feat_extractor_forward.1} parent=15 // pred_check
        %p378 = pneg %p181
      $region38: #{feat_extractor_forward.1} parent=15 // pred_check_branch
        %380 = sbr.rel (%p378) target = $region40
      $region39: #{feat_extractor_forward.1} parent=15 // pred_region
        %p381 = scmp.lt.s32.totalorder %s24, 1
        %s382 = scalar_select %p381, %s24, 1
        %s383 = smul.addr %s382, 32
        %s384 = smul.addr %s383, 4
        %s385 = scalar_lea.vmem %s5, %s384
      $region40: #{feat_extractor_forward.1} parent=15 // pred_fallthru
        _
      // Predicated region
      $region41: #{feat_extractor_forward.1} parent=15 // pred_check
        %p386 = pneg %p207
      $region42: #{feat_extractor_forward.1} parent=15 // pred_check_branch
        %388 = sbr.rel (%p386) target = $region44
      $region43: #{feat_extractor_forward.1} parent=15 // pred_region
        %p389 = scmp.lt.s32.totalorder %s24, 1
        %s390 = scalar_select %p389, %s24, 1
        %s391 = smul.addr %s390, 2
        %s392 = scalar_lea.vmem %s6, %s391
      $region44: #{feat_extractor_forward.1} parent=15 // pred_fallthru
        _
      // Predicated region
      $region45: #{feat_extractor_forward.1} parent=15 // pred_check
        %p393 = pneg %p233
      $region46: #{feat_extractor_forward.1} parent=15 // pred_check_branch
        %395 = sbr.rel (%p393) target = $region48
      $region47: #{feat_extractor_forward.1} parent=15 // pred_region
        %p396 = scmp.lt.s32.totalorder %s24, 1
        %s397 = scalar_select %p396, %s24, 1
        %s398 = smul.addr %s397, 64
        %s399 = smul.addr %s398, 4
        %s400 = scalar_lea.vmem %s7, %s399
      $region48: #{feat_extractor_forward.1} parent=15 // pred_fallthru
        _
      // Predicated region
      $region49: #{feat_extractor_forward.1} parent=15 // pred_check
        %p401 = pneg %p259
      $region50: #{feat_extractor_forward.1} parent=15 // pred_check_branch
        %403 = sbr.rel (%p401) target = $region52
      $region51: #{feat_extractor_forward.1} parent=15 // pred_region
        %p404 = scmp.lt.s32.totalorder %s24, 1
        %s405 = scalar_select %p404, %s24, 1
        %s406 = smul.addr %s405, 2
        %s407 = scalar_lea.vmem %s8, %s406
      $region52: #{feat_extractor_forward.1} parent=15 // pred_fallthru
        _
    $region16: #{feat_extractor_forward.1} parent=5 // pred_fallthru
      _
    %p408 = scmp.le.s32.totalorder 1, %s17
    %p409 = scmp.lt.s32.totalorder %s17, 5
    %p410 = pnand %p408, %p409
    %p411 = pneg %p410
    // Predicated region
    $region53: #{feat_extractor_forward.1} parent=5 // pred_check
      _
    $region54: #{feat_extractor_forward.1} parent=5 // pred_check_branch
      %413 = sbr.rel (%p410) target = $region56
    $region55: #{feat_extractor_forward.1} parent=5 // pred_region
      %s414 = ssub.s32 %s17, 1
      %p415 = scmp.lt.s32.totalorder %s26, 1
      %s416 = scalar_select %p415, %s26, 1
      %p417 = scmp.lt.s32.totalorder %s27, 1
      %s418 = scalar_select %p417, %s27, 1
      %s419 = smul.addr %s418, 8
      %s420 = smul.addr %s416, 16
      %s421 = sadd.s32 %s419, %s420
      %s422 = smul.addr %s421, 4
      %s423 = scalar_lea.vmem %s0, %s422
      %p424 = pneg %p57
      %p425 = pneg %p54
      %p426 = scmp.lt.s32.totalorder %s26, 1
      %s427 = scalar_select %p426, %s26, 1
      %s428 = smul.addr %s427, 16
      %s429 = smul.addr %s428, 4
      %s430 = scalar_lea.vmem %s1, %s429
      %p431 = pneg %p83
      %p432 = pneg %p80
      %p433 = scmp.lt.s32.totalorder %s26, 1
      %s434 = scalar_select %p433, %s26, 1
      %s435 = scalar_lea.vmem %s2, %s434
      %p436 = pneg %p109
      %p437 = pneg %p106
      %p438 = scmp.lt.s32.totalorder %s26, 1
      %s439 = scalar_select %p438, %s26, 1
      %s440 = smul.addr %s439, 16
      %s441 = smul.addr %s440, 4
      %s442 = scalar_lea.vmem %s3, %s441
      %p443 = pneg %p135
      %p444 = pneg %p132
      %p445 = scmp.lt.s32.totalorder %s26, 1
      %s446 = scalar_select %p445, %s26, 1
      %s447 = scalar_lea.vmem %s4, %s446
      %p448 = pneg %p161
      %p449 = pneg %p158
      %p450 = scmp.lt.s32.totalorder %s26, 1
      %s451 = scalar_select %p450, %s26, 1
      %s452 = smul.addr %s451, 32
      %s453 = smul.addr %s452, 4
      %s454 = scalar_lea.vmem %s5, %s453
      %p455 = pneg %p187
      %p456 = pneg %p184
      %p457 = scmp.lt.s32.totalorder %s26, 1
      %s458 = scalar_select %p457, %s26, 1
      %s459 = smul.addr %s458, 2
      %s460 = scalar_lea.vmem %s6, %s459
      %p461 = pneg %p213
      %p462 = pneg %p210
      %p463 = scmp.lt.s32.totalorder %s26, 1
      %s464 = scalar_select %p463, %s26, 1
      %s465 = smul.addr %s464, 64
      %s466 = smul.addr %s465, 4
      %s467 = scalar_lea.vmem %s7, %s466
      %p468 = pneg %p239
      %p469 = pneg %p236
      %p470 = scmp.lt.s32.totalorder %s26, 1
      %s471 = scalar_select %p470, %s26, 1
      %s472 = smul.addr %s471, 2
      %s473 = scalar_lea.vmem %s8, %s472
      %p474 = pneg %p265
      %p475 = pneg %p262
      %p476 = pneg %p293
      %p477 = pneg %p290
      %p478 = scmp.lt.s32.totalorder %s26, 1
      %s479 = scalar_select %p478, %s26, 1
      %p480 = scmp.lt.s32.totalorder %s27, 1
      %s481 = scalar_select %p480, %s27, 1
      %s482 = smul.addr %s481, 32
      %s483 = smul.addr %s479, 64
      %s484 = sadd.s32 %s482, %s483
      %s485 = smul.addr %s484, 4
      %s486 = scalar_lea.vmem %s9, %s485
      %p487 = pneg %p319
      %p488 = pneg %p316
      %p489 = scmp.lt.s32.totalorder %s26, 1
      %s490 = scalar_select %p489, %s26, 1
      %s491 = smul.addr %s490, 5
      %s492 = smul.addr %s491, 2
      %s493 = scalar_lea.vmem %s10, %s492
      %p494 = scmp.lt.s32.totalorder %s26, 1
      %s495 = scalar_select %p494, %s26, 1
      %p496 = scmp.lt.s32.totalorder %s27, 1
      %s497 = scalar_select %p496, %s27, 1
      %s498 = smul.addr %s497, 8
      %s499 = smul.addr %s495, 16
      %s500 = sadd.s32 %s498, %s499
      %s501 = smul.addr %s500, 4
      %s502 = scalar_lea.vmem %s0, %s501
      %p503 = scmp.lt.s32.totalorder %s26, 1
      %s504 = scalar_select %p503, %s26, 1
      %s505 = smul.addr %s504, 16
      %s506 = smul.addr %s505, 4
      %s507 = scalar_lea.vmem %s1, %s506
      %p508 = scmp.lt.s32.totalorder %s26, 1
      %s509 = scalar_select %p508, %s26, 1
      %s510 = scalar_lea.vmem %s2, %s509
      %p511 = scmp.lt.s32.totalorder %s26, 1
      %s512 = scalar_select %p511, %s26, 1
      %s513 = smul.addr %s512, 16
      %s514 = smul.addr %s513, 4
      %s515 = scalar_lea.vmem %s3, %s514
      %p516 = scmp.lt.s32.totalorder %s26, 1
      %s517 = scalar_select %p516, %s26, 1
      %s518 = scalar_lea.vmem %s4, %s517
      %p519 = scmp.lt.s32.totalorder %s26, 1
      %s520 = scalar_select %p519, %s26, 1
      %s521 = smul.addr %s520, 32
      %s522 = smul.addr %s521, 4
      %s523 = scalar_lea.vmem %s5, %s522
      %p524 = scmp.lt.s32.totalorder %s26, 1
      %s525 = scalar_select %p524, %s26, 1
      %s526 = smul.addr %s525, 2
      %s527 = scalar_lea.vmem %s6, %s526
      %p528 = scmp.lt.s32.totalorder %s26, 1
      %s529 = scalar_select %p528, %s26, 1
      %s530 = smul.addr %s529, 64
      %s531 = smul.addr %s530, 4
      %s532 = scalar_lea.vmem %s7, %s531
      %p533 = scmp.lt.s32.totalorder %s26, 1
      %s534 = scalar_select %p533, %s26, 1
      %s535 = smul.addr %s534, 2
      %s536 = scalar_lea.vmem %s8, %s535
      %p537 = scmp.lt.s32.totalorder %s26, 1
      %s538 = scalar_select %p537, %s26, 1
      %p539 = scmp.lt.s32.totalorder %s27, 1
      %s540 = scalar_select %p539, %s27, 1
      %s541 = smul.addr %s540, 32
      %s542 = smul.addr %s538, 64
      %s543 = sadd.s32 %s541, %s542
      %s544 = smul.addr %s543, 4
      %s545 = scalar_lea.vmem %s9, %s544
      %p546 = scmp.lt.s32.totalorder %s26, 1
      %s547 = scalar_select %p546, %s26, 1
      %s548 = smul.addr %s547, 5
      %s549 = smul.addr %s548, 2
      %s550 = scalar_lea.vmem %s10, %s549
      %v552 = vld [vmem:[%s502] sm:$0xf]
      %v553 = vld [vmem:[%s502 + $0x4] sm:$0xf]
      %v554 = vld [vmem:[%s502 + $0x8] sm:$0xf]
      %v555 = vld [vmem:[%s502 + $0xc] sm:$0xf]
      %v556 = vld [vmem:[%s502 + $0x10] sm:$0xf]
      %v557 = vld [vmem:[%s502 + $0x14] sm:$0xf]
      %v558 = vld [vmem:[%s502 + $0x18] sm:$0xf]
      %v559 = vld [vmem:[%s502 + $0x1c] sm:$0xf]
      %v560 = vld [vmem:[%s507] sm:$0xf]
      %v561 = vld [vmem:[%s507 + $0x4] sm:$0xf]
      %v562 = vld [vmem:[%s507 + $0x8] sm:$0xf]
      %v563 = vld [vmem:[%s507 + $0xc] sm:$0xf]
      %v564 = vld [vmem:[%s507 + $0x10] sm:$0xf]
      %v565 = vld [vmem:[%s507 + $0x14] sm:$0xf]
      %v566 = vld [vmem:[%s507 + $0x18] sm:$0xf]
      %v567 = vld [vmem:[%s507 + $0x1c] sm:$0xf]
      %v568 = vld [vmem:[%s507 + $0x20] sm:$0xf]
      %v569 = vld [vmem:[%s507 + $0x24] sm:$0xf]
      %v570 = vld [vmem:[%s507 + $0x28] sm:$0xf]
      %v571 = vld [vmem:[%s507 + $0x2c] sm:$0xf]
      %v572 = vld [vmem:[%s507 + $0x30] sm:$0xf]
      %v573 = vld [vmem:[%s507 + $0x34] sm:$0xf]
      %v574 = vld [vmem:[%s507 + $0x38] sm:$0xf]
      %v575 = vld [vmem:[%s507 + $0x3c] sm:$0xf]
      %v576 = vld [vmem:[%s510] sm:$0x1]
      %v578 = vlaneseq
      %v579 = vshrl.u32 %v578, 7
      %v580 = vsub.s32 0, %v579
      %v581 = vrot.slane %v576, %v580
      %v591 = vunpack.c.l.b16 %v552
      %v592 = vunpack.c.l.b16 %v553
      %v593 = vunpack.c.l.b16 %v554
      %v594 = vunpack.c.l.b16 %v555
      %v595 = vunpack.c.l.b16 %v556
      %v596 = vunpack.c.l.b16 %v557
      %v597 = vunpack.c.l.b16 %v558
      %v598 = vunpack.c.l.b16 %v559
      %v599 = vpack.c.b16 %v592, %v591
      %v600 = vpack.c.b16 %v594, %v593
      %v601 = vpack.c.b16 %v596, %v595
      %v602 = vpack.c.b16 %v598, %v597
      %v623 = vunpack.c.l.b16 %v560
      %v624 = vunpack.c.l.b16 %v561
      %v625 = vunpack.c.l.b16 %v562
      %v626 = vunpack.c.l.b16 %v563
      %v627 = vunpack.c.l.b16 %v564
      %v628 = vunpack.c.l.b16 %v565
      %v629 = vunpack.c.l.b16 %v566
      %v630 = vunpack.c.l.b16 %v567
      %v631 = vunpack.c.l.b16 %v568
      %v632 = vunpack.c.l.b16 %v569
      %v633 = vunpack.c.l.b16 %v570
      %v634 = vunpack.c.l.b16 %v571
      %v635 = vunpack.c.l.b16 %v572
      %v636 = vunpack.c.l.b16 %v573
      %v637 = vunpack.c.l.b16 %v574
      %v638 = vunpack.c.l.b16 %v575
      %v639 = vpack.c.b16 %v624, %v623
      %v640 = vpack.c.b16 %v626, %v625
      %v641 = vpack.c.b16 %v628, %v627
      %v642 = vpack.c.b16 %v630, %v629
      %v643 = vpack.c.b16 %v632, %v631
      %v644 = vpack.c.b16 %v634, %v633
      %v645 = vpack.c.b16 %v636, %v635
      %v646 = vpack.c.b16 %v638, %v637
      %655 = vmatprep.subr.bf16.mxu0 0
      %656 = vmatpush1.bf16.msra.mxu0 %v646
      %657 = vmatprep.subr.bf16.mxu0 0
      %658 = vmatpush1.bf16.msra.mxu0 %v645
      %659 = vmatprep.subr.bf16.mxu0 0
      %660 = vmatpush1.bf16.msra.mxu0 %v644
      %661 = vmatprep.subr.bf16.mxu0 0
      %662 = vmatpush1.bf16.msra.mxu0 %v643
      %663 = vmatprep.subr.bf16.mxu0 0
      %664 = vmatpush1.bf16.msra.mxu0 %v642
      %665 = vmatprep.subr.bf16.mxu0 0
      %666 = vmatpush1.bf16.msra.mxu0 %v641
      %667 = vmatprep.subr.bf16.mxu0 0
      %668 = vmatpush1.bf16.msra.mxu0 %v640
      %669 = vmatprep.subr.bf16.mxu0 0
      %670 = vmatpush1.bf16.msra.mxu0 %v639
      %671 = vmatprep.subr.bf16.mxu0 0
      %672 = vmatpush2.bf16.msra.mxu0 0
      %673 = vmatprep.subr.bf16.mxu0 0
      %674 = vmatpush2.bf16.msra.mxu0 0
      %675 = vmatprep.subr.bf16.mxu0 0
      %676 = vmatpush2.bf16.msra.mxu0 0
      %677 = vmatprep.subr.bf16.mxu0 0
      %678 = vmatpush2.bf16.msra.mxu0 0
      %679 = vmatprep.subr.bf16.mxu0 0
      %680 = vmatpush2.bf16.msra.mxu0 0
      %681 = vmatprep.subr.bf16.mxu0 0
      %682 = vmatpush2.bf16.msra.mxu0 0
      %683 = vmatprep.subr.bf16.mxu0 0
      %684 = vmatpush2.bf16.msra.mxu0 0
      %685 = vmatprep.subr.bf16.mxu0 0
      %686 = vmatpush2.bf16.msra.mxu0 0
      %687 = vmatprep.mubr.bf16.mxu0 0
      %688 = vmatmul.mubr.bf16.gmra.mxu0 %v599
      %v689 = vpop.f32.mrf.mxu0
      %v690 = vadd.f32 %v581, %v689
      %v691 = vpop.f32.mrf.mxu0
      %v692 = vpop.f32.mrf.mxu0
      %v693 = vadd.f32 %v581, %v692
      %v694 = vpop.f32.mrf.mxu0
      %695 = vmatprep.mubr.bf16.mxu0 0
      %696 = vmatmul.mubr.bf16.gmra.mxu0 %v600
      %v697 = vpop.f32.mrf.mxu0
      %v698 = vadd.f32 %v581, %v697
      %v699 = vpop.f32.mrf.mxu0
      %v700 = vpop.f32.mrf.mxu0
      %v701 = vadd.f32 %v581, %v700
      %v702 = vpop.f32.mrf.mxu0
      %703 = vmatprep.mubr.bf16.mxu0 0
      %704 = vmatmul.mubr.bf16.gmra.mxu0 %v601
      %v705 = vpop.f32.mrf.mxu0
      %v706 = vadd.f32 %v581, %v705
      %v707 = vpop.f32.mrf.mxu0
      %v708 = vpop.f32.mrf.mxu0
      %v709 = vadd.f32 %v581, %v708
      %v710 = vpop.f32.mrf.mxu0
      %711 = vmatprep.mubr.bf16.mxu0 0
      %712 = vmatmul.mubr.bf16.gmra.mxu0 %v602
      %v713 = vpop.f32.mrf.mxu0
      %v714 = vadd.f32 %v581, %v713
      %v715 = vpop.f32.mrf.mxu0
      %v716 = vpop.f32.mrf.mxu0
      %v717 = vadd.f32 %v581, %v716
      %v718 = vpop.f32.mrf.mxu0
      %719 = vdwg.mxu0
      %v720 = vmax.f32 %v690, 0.0
      %v721 = vmax.f32 %v693, 0.0
      %v722 = vmax.f32 %v698, 0.0
      %v723 = vmax.f32 %v701, 0.0
      %v724 = vmax.f32 %v706, 0.0
      %v725 = vmax.f32 %v709, 0.0
      %v726 = vmax.f32 %v714, 0.0
      %v727 = vmax.f32 %v717, 0.0
      %v728 = vpack.c.bf16 %v721, %v720
      %v729 = vpack.c.bf16 %v723, %v722
      %v730 = vpack.c.bf16 %v725, %v724
      %v731 = vpack.c.bf16 %v727, %v726
      %v732 = vld [vmem:[%s515] sm:$0xf]
      %v733 = vld [vmem:[%s515 + $0x4] sm:$0xf]
      %v734 = vld [vmem:[%s515 + $0x8] sm:$0xf]
      %v735 = vld [vmem:[%s515 + $0xc] sm:$0xf]
      %v736 = vld [vmem:[%s515 + $0x10] sm:$0xf]
      %v737 = vld [vmem:[%s515 + $0x14] sm:$0xf]
      %v738 = vld [vmem:[%s515 + $0x18] sm:$0xf]
      %v739 = vld [vmem:[%s515 + $0x1c] sm:$0xf]
      %v740 = vld [vmem:[%s515 + $0x20] sm:$0xf]
      %v741 = vld [vmem:[%s515 + $0x24] sm:$0xf]
      %v742 = vld [vmem:[%s515 + $0x28] sm:$0xf]
      %v743 = vld [vmem:[%s515 + $0x2c] sm:$0xf]
      %v744 = vld [vmem:[%s515 + $0x30] sm:$0xf]
      %v745 = vld [vmem:[%s515 + $0x34] sm:$0xf]
      %v746 = vld [vmem:[%s515 + $0x38] sm:$0xf]
      %v747 = vld [vmem:[%s515 + $0x3c] sm:$0xf]
      %v748 = vld [vmem:[%s518] sm:$0x1]
      %v750 = vlaneseq
      %v751 = vshrl.u32 %v750, 7
      %v752 = vsub.s32 0, %v751
      %v753 = vrot.slane %v748, %v752
      %v771 = vunpack.c.l.b16 %v732
      %v772 = vunpack.c.l.b16 %v733
      %v773 = vunpack.c.l.b16 %v734
      %v774 = vunpack.c.l.b16 %v735
      %v775 = vunpack.c.l.b16 %v736
      %v776 = vunpack.c.l.b16 %v737
      %v777 = vunpack.c.l.b16 %v738
      %v778 = vunpack.c.l.b16 %v739
      %v779 = vunpack.c.l.b16 %v740
      %v780 = vunpack.c.l.b16 %v741
      %v781 = vunpack.c.l.b16 %v742
      %v782 = vunpack.c.l.b16 %v743
      %v783 = vunpack.c.l.b16 %v744
      %v784 = vunpack.c.l.b16 %v745
      %v785 = vunpack.c.l.b16 %v746
      %v786 = vunpack.c.l.b16 %v747
      %v787 = vpack.c.b16 %v772, %v771
      %v788 = vpack.c.b16 %v774, %v773
      %v789 = vpack.c.b16 %v776, %v775
      %v790 = vpack.c.b16 %v778, %v777
      %v791 = vpack.c.b16 %v780, %v779
      %v792 = vpack.c.b16 %v782, %v781
      %v793 = vpack.c.b16 %v784, %v783
      %v794 = vpack.c.b16 %v786, %v785
      %803 = vmatprep.subr.bf16.mxu0 0
      %804 = vmatpush1.bf16.msra.mxu0 %v794
      %805 = vmatprep.subr.bf16.mxu0 0
      %806 = vmatpush1.bf16.msra.mxu0 %v793
      %807 = vmatprep.subr.bf16.mxu0 0
      %808 = vmatpush1.bf16.msra.mxu0 %v792
      %809 = vmatprep.subr.bf16.mxu0 0
      %810 = vmatpush1.bf16.msra.mxu0 %v791
      %811 = vmatprep.subr.bf16.mxu0 0
      %812 = vmatpush1.bf16.msra.mxu0 %v790
      %813 = vmatprep.subr.bf16.mxu0 0
      %814 = vmatpush1.bf16.msra.mxu0 %v789
      %815 = vmatprep.subr.bf16.mxu0 0
      %816 = vmatpush1.bf16.msra.mxu0 %v788
      %817 = vmatprep.subr.bf16.mxu0 0
      %818 = vmatpush1.bf16.msra.mxu0 %v787
      %819 = vmatprep.subr.bf16.mxu0 0
      %820 = vmatpush2.bf16.msra.mxu0 0
      %821 = vmatprep.subr.bf16.mxu0 0
      %822 = vmatpush2.bf16.msra.mxu0 0
      %823 = vmatprep.subr.bf16.mxu0 0
      %824 = vmatpush2.bf16.msra.mxu0 0
      %825 = vmatprep.subr.bf16.mxu0 0
      %826 = vmatpush2.bf16.msra.mxu0 0
      %827 = vmatprep.subr.bf16.mxu0 0
      %828 = vmatpush2.bf16.msra.mxu0 0
      %829 = vmatprep.subr.bf16.mxu0 0
      %830 = vmatpush2.bf16.msra.mxu0 0
      %831 = vmatprep.subr.bf16.mxu0 0
      %832 = vmatpush2.bf16.msra.mxu0 0
      %833 = vmatprep.subr.bf16.mxu0 0
      %834 = vmatpush2.bf16.msra.mxu0 0
      %835 = vmatprep.mubr.bf16.mxu0 0
      %836 = vmatmul.mubr.bf16.gmra.mxu0 %v728
      %v837 = vpop.f32.mrf.mxu0
      %v838 = vadd.f32 %v753, %v837
      %v839 = vpop.f32.mrf.mxu0
      %v840 = vpop.f32.mrf.mxu0
      %v841 = vadd.f32 %v753, %v840
      %v842 = vpop.f32.mrf.mxu0
      %843 = vmatprep.mubr.bf16.mxu0 0
      %844 = vmatmul.mubr.bf16.gmra.mxu0 %v729
      %v845 = vpop.f32.mrf.mxu0
      %v846 = vadd.f32 %v753, %v845
      %v847 = vpop.f32.mrf.mxu0
      %v848 = vpop.f32.mrf.mxu0
      %v849 = vadd.f32 %v753, %v848
      %v850 = vpop.f32.mrf.mxu0
      %851 = vmatprep.mubr.bf16.mxu0 0
      %852 = vmatmul.mubr.bf16.gmra.mxu0 %v730
      %v853 = vpop.f32.mrf.mxu0
      %v854 = vadd.f32 %v753, %v853
      %v855 = vpop.f32.mrf.mxu0
      %v856 = vpop.f32.mrf.mxu0
      %v857 = vadd.f32 %v753, %v856
      %v858 = vpop.f32.mrf.mxu0
      %859 = vmatprep.mubr.bf16.mxu0 0
      %860 = vmatmul.mubr.bf16.gmra.mxu0 %v731
      %v861 = vpop.f32.mrf.mxu0
      %v862 = vadd.f32 %v753, %v861
      %v863 = vpop.f32.mrf.mxu0
      %v864 = vpop.f32.mrf.mxu0
      %v865 = vadd.f32 %v753, %v864
      %v866 = vpop.f32.mrf.mxu0
      %867 = vdwg.mxu0
      %v868 = vmax.f32 %v838, 0.0
      %v869 = vmax.f32 %v841, 0.0
      %v870 = vmax.f32 %v846, 0.0
      %v871 = vmax.f32 %v849, 0.0
      %v872 = vmax.f32 %v854, 0.0
      %v873 = vmax.f32 %v857, 0.0
      %v874 = vmax.f32 %v862, 0.0
      %v875 = vmax.f32 %v865, 0.0
      %v876 = vpack.c.bf16 %v869, %v868
      %v877 = vpack.c.bf16 %v871, %v870
      %v878 = vpack.c.bf16 %v873, %v872
      %v879 = vpack.c.bf16 %v875, %v874
      %v880 = vld [vmem:[%s523] sm:$0xff]
      %v881 = vld [vmem:[%s523 + $0x8] sm:$0xff]
      %v882 = vld [vmem:[%s523 + $0x10] sm:$0xff]
      %v883 = vld [vmem:[%s523 + $0x18] sm:$0xff]
      %v884 = vld [vmem:[%s523 + $0x20] sm:$0xff]
      %v885 = vld [vmem:[%s523 + $0x28] sm:$0xff]
      %v886 = vld [vmem:[%s523 + $0x30] sm:$0xff]
      %v887 = vld [vmem:[%s523 + $0x38] sm:$0xff]
      %v888 = vld [vmem:[%s523 + $0x40] sm:$0xff]
      %v889 = vld [vmem:[%s523 + $0x48] sm:$0xff]
      %v890 = vld [vmem:[%s523 + $0x50] sm:$0xff]
      %v891 = vld [vmem:[%s523 + $0x58] sm:$0xff]
      %v892 = vld [vmem:[%s523 + $0x60] sm:$0xff]
      %v893 = vld [vmem:[%s523 + $0x68] sm:$0xff]
      %v894 = vld [vmem:[%s523 + $0x70] sm:$0xff]
      %v895 = vld [vmem:[%s523 + $0x78] sm:$0xff]
      %v896 = vld [vmem:[%s527] sm:$0x3]
      %v898 = vlaneseq
      %v899 = vshrl.u32 %v898, 7
      %v900 = vsub.s32 0, %v899
      %v901 = vrot.slane %v896, %v900
      %v902 = vlaneseq
      %v903 = vshrl.u32 %v902, 7
      %v904 = vsub.s32 1, %v903
      %v905 = vrot.slane %v896, %v904
      %v924 = vunpack.c.l.b16 %v880
      %v925 = vunpack.c.h.b16 %v880
      %v926 = vunpack.c.l.b16 %v881
      %v927 = vunpack.c.h.b16 %v881
      %v928 = vunpack.c.l.b16 %v882
      %v929 = vunpack.c.h.b16 %v882
      %v930 = vunpack.c.l.b16 %v883
      %v931 = vunpack.c.h.b16 %v883
      %v932 = vunpack.c.l.b16 %v884
      %v933 = vunpack.c.h.b16 %v884
      %v934 = vunpack.c.l.b16 %v885
      %v935 = vunpack.c.h.b16 %v885
      %v936 = vunpack.c.l.b16 %v886
      %v937 = vunpack.c.h.b16 %v886
      %v938 = vunpack.c.l.b16 %v887
      %v939 = vunpack.c.h.b16 %v887
      %v940 = vunpack.c.l.b16 %v888
      %v941 = vunpack.c.h.b16 %v888
      %v942 = vunpack.c.l.b16 %v889
      %v943 = vunpack.c.h.b16 %v889
      %v944 = vunpack.c.l.b16 %v890
      %v945 = vunpack.c.h.b16 %v890
      %v946 = vunpack.c.l.b16 %v891
      %v947 = vunpack.c.h.b16 %v891
      %v948 = vunpack.c.l.b16 %v892
      %v949 = vunpack.c.h.b16 %v892
      %v950 = vunpack.c.l.b16 %v893
      %v951 = vunpack.c.h.b16 %v893
      %v952 = vunpack.c.l.b16 %v894
      %v953 = vunpack.c.h.b16 %v894
      %v954 = vunpack.c.l.b16 %v895
      %v955 = vunpack.c.h.b16 %v895
      %v956 = vpack.c.b16 %v926, %v924
      %v957 = vpack.c.b16 %v927, %v925
      %v958 = vpack.c.b16 %v930, %v928
      %v959 = vpack.c.b16 %v931, %v929
      %v960 = vpack.c.b16 %v934, %v932
      %v961 = vpack.c.b16 %v935, %v933
      %v962 = vpack.c.b16 %v938, %v936
      %v963 = vpack.c.b16 %v939, %v937
      %v964 = vpack.c.b16 %v942, %v940
      %v965 = vpack.c.b16 %v943, %v941
      %v966 = vpack.c.b16 %v946, %v944
      %v967 = vpack.c.b16 %v947, %v945
      %v968 = vpack.c.b16 %v950, %v948
      %v969 = vpack.c.b16 %v951, %v949
      %v970 = vpack.c.b16 %v954, %v952
      %v971 = vpack.c.b16 %v955, %v953
      %988 = vmatprep.subr.bf16.mxu0 %v971
      %989 = vmatpush1.bf16.msra.mxu0 %v970
      %990 = vmatprep.subr.bf16.mxu0 %v969
      %991 = vmatpush1.bf16.msra.mxu0 %v968
      %992 = vmatprep.subr.bf16.mxu0 %v967
      %993 = vmatpush1.bf16.msra.mxu0 %v966
      %994 = vmatprep.subr.bf16.mxu0 %v965
      %995 = vmatpush1.bf16.msra.mxu0 %v964
      %996 = vmatprep.subr.bf16.mxu0 %v963
      %997 = vmatpush1.bf16.msra.mxu0 %v962
      %998 = vmatprep.subr.bf16.mxu0 %v961
      %999 = vmatpush1.bf16.msra.mxu0 %v960
      %1000 = vmatprep.subr.bf16.mxu0 %v959
      %1001 = vmatpush1.bf16.msra.mxu0 %v958
      %1002 = vmatprep.subr.bf16.mxu0 %v957
      %1003 = vmatpush1.bf16.msra.mxu0 %v956
      %1004 = vmatprep.subr.bf16.mxu0 0
      %1005 = vmatpush2.bf16.msra.mxu0 0
      %1006 = vmatprep.subr.bf16.mxu0 0
      %1007 = vmatpush2.bf16.msra.mxu0 0
      %1008 = vmatprep.subr.bf16.mxu0 0
      %1009 = vmatpush2.bf16.msra.mxu0 0
      %1010 = vmatprep.subr.bf16.mxu0 0
      %1011 = vmatpush2.bf16.msra.mxu0 0
      %1012 = vmatprep.subr.bf16.mxu0 0
      %1013 = vmatpush2.bf16.msra.mxu0 0
      %1014 = vmatprep.subr.bf16.mxu0 0
      %1015 = vmatpush2.bf16.msra.mxu0 0
      %1016 = vmatprep.subr.bf16.mxu0 0
      %1017 = vmatpush2.bf16.msra.mxu0 0
      %1018 = vmatprep.subr.bf16.mxu0 0
      %1019 = vmatpush2.bf16.msra.mxu0 0
      %1020 = vmatprep.mubr.bf16.mxu0 0
      %1021 = vmatmul.mubr.bf16.gmra.mxu0 %v876
      %v1022 = vpop.f32.mrf.mxu0
      %v1023 = vadd.f32 %v901, %v1022
      %v1024 = vpop.f32.mrf.mxu0
      %v1025 = vadd.f32 %v905, %v1024
      %v1026 = vpop.f32.mrf.mxu0
      %v1027 = vadd.f32 %v901, %v1026
      %v1028 = vpop.f32.mrf.mxu0
      %v1029 = vadd.f32 %v905, %v1028
      %1030 = vmatprep.mubr.bf16.mxu0 0
      %1031 = vmatmul.mubr.bf16.gmra.mxu0 %v877
      %v1032 = vpop.f32.mrf.mxu0
      %v1033 = vadd.f32 %v901, %v1032
      %v1034 = vpop.f32.mrf.mxu0
      %v1035 = vadd.f32 %v905, %v1034
      %v1036 = vpop.f32.mrf.mxu0
      %v1037 = vadd.f32 %v901, %v1036
      %v1038 = vpop.f32.mrf.mxu0
      %v1039 = vadd.f32 %v905, %v1038
      %1040 = vmatprep.mubr.bf16.mxu0 0
      %1041 = vmatmul.mubr.bf16.gmra.mxu0 %v878
      %v1042 = vpop.f32.mrf.mxu0
      %v1043 = vadd.f32 %v901, %v1042
      %v1044 = vpop.f32.mrf.mxu0
      %v1045 = vadd.f32 %v905, %v1044
      %v1046 = vpop.f32.mrf.mxu0
      %v1047 = vadd.f32 %v901, %v1046
      %v1048 = vpop.f32.mrf.mxu0
      %v1049 = vadd.f32 %v905, %v1048
      %1050 = vmatprep.mubr.bf16.mxu0 0
      %1051 = vmatmul.mubr.bf16.gmra.mxu0 %v879
      %v1052 = vpop.f32.mrf.mxu0
      %v1053 = vadd.f32 %v901, %v1052
      %v1054 = vpop.f32.mrf.mxu0
      %v1055 = vadd.f32 %v905, %v1054
      %v1056 = vpop.f32.mrf.mxu0
      %v1057 = vadd.f32 %v901, %v1056
      %v1058 = vpop.f32.mrf.mxu0
      %v1059 = vadd.f32 %v905, %v1058
      %1060 = vdwg.mxu0
      %v1061 = vmax.f32 %v1023, 0.0
      %v1062 = vmax.f32 %v1025, 0.0
      %v1063 = vmax.f32 %v1027, 0.0
      %v1064 = vmax.f32 %v1029, 0.0
      %v1065 = vmax.f32 %v1033, 0.0
      %v1066 = vmax.f32 %v1035, 0.0
      %v1067 = vmax.f32 %v1037, 0.0
      %v1068 = vmax.f32 %v1039, 0.0
      %v1069 = vmax.f32 %v1043, 0.0
      %v1070 = vmax.f32 %v1045, 0.0
      %v1071 = vmax.f32 %v1047, 0.0
      %v1072 = vmax.f32 %v1049, 0.0
      %v1073 = vmax.f32 %v1053, 0.0
      %v1074 = vmax.f32 %v1055, 0.0
      %v1075 = vmax.f32 %v1057, 0.0
      %v1076 = vmax.f32 %v1059, 0.0
      %v1077 = vpack.c.bf16 %v1063, %v1061
      %v1078 = vpack.c.bf16 %v1064, %v1062
      %v1079 = vpack.c.bf16 %v1067, %v1065
      %v1080 = vpack.c.bf16 %v1068, %v1066
      %v1081 = vpack.c.bf16 %v1071, %v1069
      %v1082 = vpack.c.bf16 %v1072, %v1070
      %v1083 = vpack.c.bf16 %v1075, %v1073
      %v1084 = vpack.c.bf16 %v1076, %v1074
      %v1085 = vld [vmem:[%s532] sm:$0xff]
      %v1086 = vld [vmem:[%s532 + $0x8] sm:$0xff]
      %v1087 = vld [vmem:[%s532 + $0x10] sm:$0xff]
      %v1088 = vld [vmem:[%s532 + $0x18] sm:$0xff]
      %v1089 = vld [vmem:[%s532 + $0x20] sm:$0xff]
      %v1090 = vld [vmem:[%s532 + $0x28] sm:$0xff]
      %v1091 = vld [vmem:[%s532 + $0x30] sm:$0xff]
      %v1092 = vld [vmem:[%s532 + $0x38] sm:$0xff]
      %v1093 = vld [vmem:[%s532 + $0x40] sm:$0xff]
      %v1094 = vld [vmem:[%s532 + $0x48] sm:$0xff]
      %v1095 = vld [vmem:[%s532 + $0x50] sm:$0xff]
      %v1096 = vld [vmem:[%s532 + $0x58] sm:$0xff]
      %v1097 = vld [vmem:[%s532 + $0x60] sm:$0xff]
      %v1098 = vld [vmem:[%s532 + $0x68] sm:$0xff]
      %v1099 = vld [vmem:[%s532 + $0x70] sm:$0xff]
      %v1100 = vld [vmem:[%s532 + $0x78] sm:$0xff]
      %v1101 = vld [vmem:[%s532 + $0x80] sm:$0xff]
      %v1102 = vld [vmem:[%s532 + $0x88] sm:$0xff]
      %v1103 = vld [vmem:[%s532 + $0x90] sm:$0xff]
      %v1104 = vld [vmem:[%s532 + $0x98] sm:$0xff]
      %v1105 = vld [vmem:[%s532 + $0xa0] sm:$0xff]
      %v1106 = vld [vmem:[%s532 + $0xa8] sm:$0xff]
      %v1107 = vld [vmem:[%s532 + $0xb0] sm:$0xff]
      %v1108 = vld [vmem:[%s532 + $0xb8] sm:$0xff]
      %v1109 = vld [vmem:[%s532 + $0xc0] sm:$0xff]
      %v1110 = vld [vmem:[%s532 + $0xc8] sm:$0xff]
      %v1111 = vld [vmem:[%s532 + $0xd0] sm:$0xff]
      %v1112 = vld [vmem:[%s532 + $0xd8] sm:$0xff]
      %v1113 = vld [vmem:[%s532 + $0xe0] sm:$0xff]
      %v1114 = vld [vmem:[%s532 + $0xe8] sm:$0xff]
      %v1115 = vld [vmem:[%s532 + $0xf0] sm:$0xff]
      %v1116 = vld [vmem:[%s532 + $0xf8] sm:$0xff]
      %v1117 = vld [vmem:[%s536] sm:$0x3]
      %v1119 = vlaneseq
      %v1120 = vshrl.u32 %v1119, 7
      %v1121 = vsub.s32 0, %v1120
      %v1122 = vrot.slane %v1117, %v1121
      %v1123 = vlaneseq
      %v1124 = vshrl.u32 %v1123, 7
      %v1125 = vsub.s32 1, %v1124
      %v1126 = vrot.slane %v1117, %v1125
      %v1161 = vunpack.c.l.b16 %v1085
      %v1162 = vunpack.c.h.b16 %v1085
      %v1163 = vunpack.c.l.b16 %v1086
      %v1164 = vunpack.c.h.b16 %v1086
      %v1165 = vunpack.c.l.b16 %v1087
      %v1166 = vunpack.c.h.b16 %v1087
      %v1167 = vunpack.c.l.b16 %v1088
      %v1168 = vunpack.c.h.b16 %v1088
      %v1169 = vunpack.c.l.b16 %v1089
      %v1170 = vunpack.c.h.b16 %v1089
      %v1171 = vunpack.c.l.b16 %v1090
      %v1172 = vunpack.c.h.b16 %v1090
      %v1173 = vunpack.c.l.b16 %v1091
      %v1174 = vunpack.c.h.b16 %v1091
      %v1175 = vunpack.c.l.b16 %v1092
      %v1176 = vunpack.c.h.b16 %v1092
      %v1177 = vunpack.c.l.b16 %v1093
      %v1178 = vunpack.c.h.b16 %v1093
      %v1179 = vunpack.c.l.b16 %v1094
      %v1180 = vunpack.c.h.b16 %v1094
      %v1181 = vunpack.c.l.b16 %v1095
      %v1182 = vunpack.c.h.b16 %v1095
      %v1183 = vunpack.c.l.b16 %v1096
      %v1184 = vunpack.c.h.b16 %v1096
      %v1185 = vunpack.c.l.b16 %v1097
      %v1186 = vunpack.c.h.b16 %v1097
      %v1187 = vunpack.c.l.b16 %v1098
      %v1188 = vunpack.c.h.b16 %v1098
      %v1189 = vunpack.c.l.b16 %v1099
      %v1190 = vunpack.c.h.b16 %v1099
      %v1191 = vunpack.c.l.b16 %v1100
      %v1192 = vunpack.c.h.b16 %v1100
      %v1193 = vunpack.c.l.b16 %v1101
      %v1194 = vunpack.c.h.b16 %v1101
      %v1195 = vunpack.c.l.b16 %v1102
      %v1196 = vunpack.c.h.b16 %v1102
      %v1197 = vunpack.c.l.b16 %v1103
      %v1198 = vunpack.c.h.b16 %v1103
      %v1199 = vunpack.c.l.b16 %v1104
      %v1200 = vunpack.c.h.b16 %v1104
      %v1201 = vunpack.c.l.b16 %v1105
      %v1202 = vunpack.c.h.b16 %v1105
      %v1203 = vunpack.c.l.b16 %v1106
      %v1204 = vunpack.c.h.b16 %v1106
      %v1205 = vunpack.c.l.b16 %v1107
      %v1206 = vunpack.c.h.b16 %v1107
      %v1207 = vunpack.c.l.b16 %v1108
      %v1208 = vunpack.c.h.b16 %v1108
      %v1209 = vunpack.c.l.b16 %v1109
      %v1210 = vunpack.c.h.b16 %v1109
      %v1211 = vunpack.c.l.b16 %v1110
      %v1212 = vunpack.c.h.b16 %v1110
      %v1213 = vunpack.c.l.b16 %v1111
      %v1214 = vunpack.c.h.b16 %v1111
      %v1215 = vunpack.c.l.b16 %v1112
      %v1216 = vunpack.c.h.b16 %v1112
      %v1217 = vunpack.c.l.b16 %v1113
      %v1218 = vunpack.c.h.b16 %v1113
      %v1219 = vunpack.c.l.b16 %v1114
      %v1220 = vunpack.c.h.b16 %v1114
      %v1221 = vunpack.c.l.b16 %v1115
      %v1222 = vunpack.c.h.b16 %v1115
      %v1223 = vunpack.c.l.b16 %v1116
      %v1224 = vunpack.c.h.b16 %v1116
      %v1225 = vpack.c.b16 %v1163, %v1161
      %v1226 = vpack.c.b16 %v1164, %v1162
      %v1227 = vpack.c.b16 %v1167, %v1165
      %v1228 = vpack.c.b16 %v1168, %v1166
      %v1229 = vpack.c.b16 %v1171, %v1169
      %v1230 = vpack.c.b16 %v1172, %v1170
      %v1231 = vpack.c.b16 %v1175, %v1173
      %v1232 = vpack.c.b16 %v1176, %v1174
      %v1233 = vpack.c.b16 %v1179, %v1177
      %v1234 = vpack.c.b16 %v1180, %v1178
      %v1235 = vpack.c.b16 %v1183, %v1181
      %v1236 = vpack.c.b16 %v1184, %v1182
      %v1237 = vpack.c.b16 %v1187, %v1185
      %v1238 = vpack.c.b16 %v1188, %v1186
      %v1239 = vpack.c.b16 %v1191, %v1189
      %v1240 = vpack.c.b16 %v1192, %v1190
      %v1241 = vpack.c.b16 %v1195, %v1193
      %v1242 = vpack.c.b16 %v1196, %v1194
      %v1243 = vpack.c.b16 %v1199, %v1197
      %v1244 = vpack.c.b16 %v1200, %v1198
      %v1245 = vpack.c.b16 %v1203, %v1201
      %v1246 = vpack.c.b16 %v1204, %v1202
      %v1247 = vpack.c.b16 %v1207, %v1205
      %v1248 = vpack.c.b16 %v1208, %v1206
      %v1249 = vpack.c.b16 %v1211, %v1209
      %v1250 = vpack.c.b16 %v1212, %v1210
      %v1251 = vpack.c.b16 %v1215, %v1213
      %v1252 = vpack.c.b16 %v1216, %v1214
      %v1253 = vpack.c.b16 %v1219, %v1217
      %v1254 = vpack.c.b16 %v1220, %v1218
      %v1255 = vpack.c.b16 %v1223, %v1221
      %v1256 = vpack.c.b16 %v1224, %v1222
      %1289 = vmatprep.subr.bf16.mxu0 %v1240
      %1290 = vmatpush1.bf16.msra.mxu0 %v1239
      %1291 = vmatprep.subr.bf16.mxu0 %v1238
      %1292 = vmatpush1.bf16.msra.mxu0 %v1237
      %1293 = vmatprep.subr.bf16.mxu0 %v1236
      %1294 = vmatpush1.bf16.msra.mxu0 %v1235
      %1295 = vmatprep.subr.bf16.mxu0 %v1234
      %1296 = vmatpush1.bf16.msra.mxu0 %v1233
      %1297 = vmatprep.subr.bf16.mxu0 %v1232
      %1298 = vmatpush1.bf16.msra.mxu0 %v1231
      %1299 = vmatprep.subr.bf16.mxu0 %v1230
      %1300 = vmatpush1.bf16.msra.mxu0 %v1229
      %1301 = vmatprep.subr.bf16.mxu0 %v1228
      %1302 = vmatpush1.bf16.msra.mxu0 %v1227
      %1303 = vmatprep.subr.bf16.mxu0 %v1226
      %1304 = vmatpush1.bf16.msra.mxu0 %v1225
      %1305 = vmatprep.subr.bf16.mxu0 %v1256
      %1306 = vmatpush2.bf16.msra.mxu0 %v1255
      %1307 = vmatprep.subr.bf16.mxu0 %v1254
      %1308 = vmatpush2.bf16.msra.mxu0 %v1253
      %1309 = vmatprep.subr.bf16.mxu0 %v1252
      %1310 = vmatpush2.bf16.msra.mxu0 %v1251
      %1311 = vmatprep.subr.bf16.mxu0 %v1250
      %1312 = vmatpush2.bf16.msra.mxu0 %v1249
      %1313 = vmatprep.subr.bf16.mxu0 %v1248
      %1314 = vmatpush2.bf16.msra.mxu0 %v1247
      %1315 = vmatprep.subr.bf16.mxu0 %v1246
      %1316 = vmatpush2.bf16.msra.mxu0 %v1245
      %1317 = vmatprep.subr.bf16.mxu0 %v1244
      %1318 = vmatpush2.bf16.msra.mxu0 %v1243
      %1319 = vmatprep.subr.bf16.mxu0 %v1242
      %1320 = vmatpush2.bf16.msra.mxu0 %v1241
      %1321 = vmatprep.mubr.bf16.mxu0 %v1078
      %1322 = vmatmul.mubr.bf16.gmra.mxu0 %v1077
      %v1323 = vpop.f32.mrf.mxu0
      %v1324 = vadd.f32 %v1122, %v1323
      %v1325 = vpop.f32.mrf.mxu0
      %v1326 = vadd.f32 %v1126, %v1325
      %v1327 = vpop.f32.mrf.mxu0
      %v1328 = vadd.f32 %v1122, %v1327
      %v1329 = vpop.f32.mrf.mxu0
      %v1330 = vadd.f32 %v1126, %v1329
      %1331 = vmatprep.mubr.bf16.mxu0 %v1080
      %1332 = vmatmul.mubr.bf16.gmra.mxu0 %v1079
      %v1333 = vpop.f32.mrf.mxu0
      %v1334 = vadd.f32 %v1122, %v1333
      %v1335 = vpop.f32.mrf.mxu0
      %v1336 = vadd.f32 %v1126, %v1335
      %v1337 = vpop.f32.mrf.mxu0
      %v1338 = vadd.f32 %v1122, %v1337
      %v1339 = vpop.f32.mrf.mxu0
      %v1340 = vadd.f32 %v1126, %v1339
      %1341 = vmatprep.mubr.bf16.mxu0 %v1082
      %1342 = vmatmul.mubr.bf16.gmra.mxu0 %v1081
      %v1343 = vpop.f32.mrf.mxu0
      %v1344 = vadd.f32 %v1122, %v1343
      %v1345 = vpop.f32.mrf.mxu0
      %v1346 = vadd.f32 %v1126, %v1345
      %v1347 = vpop.f32.mrf.mxu0
      %v1348 = vadd.f32 %v1122, %v1347
      %v1349 = vpop.f32.mrf.mxu0
      %v1350 = vadd.f32 %v1126, %v1349
      %1351 = vmatprep.mubr.bf16.mxu0 %v1084
      %1352 = vmatmul.mubr.bf16.gmra.mxu0 %v1083
      %v1353 = vpop.f32.mrf.mxu0
      %v1354 = vadd.f32 %v1122, %v1353
      %v1355 = vpop.f32.mrf.mxu0
      %v1356 = vadd.f32 %v1126, %v1355
      %v1357 = vpop.f32.mrf.mxu0
      %v1358 = vadd.f32 %v1122, %v1357
      %v1359 = vpop.f32.mrf.mxu0
      %v1360 = vadd.f32 %v1126, %v1359
      %1361 = vdwg.mxu0
      %v1362 = vxor.u32 %v1324, 2147483648
      %v1363 = vxor.u32 %v1326, 2147483648
      %v1364 = vxor.u32 %v1328, 2147483648
      %v1365 = vxor.u32 %v1330, 2147483648
      %v1366 = vxor.u32 %v1334, 2147483648
      %v1367 = vxor.u32 %v1336, 2147483648
      %v1368 = vxor.u32 %v1338, 2147483648
      %v1369 = vxor.u32 %v1340, 2147483648
      %v1370 = vxor.u32 %v1344, 2147483648
      %v1371 = vxor.u32 %v1346, 2147483648
      %v1372 = vxor.u32 %v1348, 2147483648
      %v1373 = vxor.u32 %v1350, 2147483648
      %v1374 = vxor.u32 %v1354, 2147483648
      %v1375 = vxor.u32 %v1356, 2147483648
      %v1376 = vxor.u32 %v1358, 2147483648
      %v1377 = vxor.u32 %v1360, 2147483648
      %v1378 = vmul.f32 %v1362, 1.442695
      %v1379 = vpow.pop %v1378
      %v1380 = vmul.f32 %v1363, 1.442695
      %v1381 = vpow.pop %v1380
      %v1382 = vmul.f32 %v1364, 1.442695
      %v1383 = vpow.pop %v1382
      %v1384 = vmul.f32 %v1365, 1.442695
      %v1385 = vpow.pop %v1384
      %v1386 = vmul.f32 %v1366, 1.442695
      %v1387 = vpow.pop %v1386
      %v1388 = vmul.f32 %v1367, 1.442695
      %v1389 = vpow.pop %v1388
      %v1390 = vmul.f32 %v1368, 1.442695
      %v1391 = vpow.pop %v1390
      %v1392 = vmul.f32 %v1369, 1.442695
      %v1393 = vpow.pop %v1392
      %v1394 = vmul.f32 %v1370, 1.442695
      %v1395 = vpow.pop %v1394
      %v1396 = vmul.f32 %v1371, 1.442695
      %v1397 = vpow.pop %v1396
      %v1398 = vmul.f32 %v1372, 1.442695
      %v1399 = vpow.pop %v1398
      %v1400 = vmul.f32 %v1373, 1.442695
      %v1401 = vpow.pop %v1400
      %v1402 = vmul.f32 %v1374, 1.442695
      %v1403 = vpow.pop %v1402
      %v1404 = vmul.f32 %v1375, 1.442695
      %v1405 = vpow.pop %v1404
      %v1406 = vmul.f32 %v1376, 1.442695
      %v1407 = vpow.pop %v1406
      %v1408 = vmul.f32 %v1377, 1.442695
      %v1409 = vpow.pop %v1408
      %v1410 = vadd.f32 %v1379, 1.0
      %v1411 = vadd.f32 %v1381, 1.0
      %v1412 = vadd.f32 %v1383, 1.0
      %v1413 = vadd.f32 %v1385, 1.0
      %v1414 = vadd.f32 %v1387, 1.0
      %v1415 = vadd.f32 %v1389, 1.0
      %v1416 = vadd.f32 %v1391, 1.0
      %v1417 = vadd.f32 %v1393, 1.0
      %v1418 = vadd.f32 %v1395, 1.0
      %v1419 = vadd.f32 %v1397, 1.0
      %v1420 = vadd.f32 %v1399, 1.0
      %v1421 = vadd.f32 %v1401, 1.0
      %v1422 = vadd.f32 %v1403, 1.0
      %v1423 = vadd.f32 %v1405, 1.0
      %v1424 = vadd.f32 %v1407, 1.0
      %v1425 = vadd.f32 %v1409, 1.0
      %v1426 = vrcp.pop %v1410
      %v1427 = vmul.f32 1.0, %v1426
      %v1428 = vrcp.pop %v1411
      %v1429 = vmul.f32 1.0, %v1428
      %v1430 = vrcp.pop %v1412
      %v1431 = vmul.f32 1.0, %v1430
      %v1432 = vrcp.pop %v1413
      %v1433 = vmul.f32 1.0, %v1432
      %v1434 = vrcp.pop %v1414
      %v1435 = vmul.f32 1.0, %v1434
      %v1436 = vrcp.pop %v1415
      %v1437 = vmul.f32 1.0, %v1436
      %v1438 = vrcp.pop %v1416
      %v1439 = vmul.f32 1.0, %v1438
      %v1440 = vrcp.pop %v1417
      %v1441 = vmul.f32 1.0, %v1440
      %v1442 = vrcp.pop %v1418
      %v1443 = vmul.f32 1.0, %v1442
      %v1444 = vrcp.pop %v1419
      %v1445 = vmul.f32 1.0, %v1444
      %v1446 = vrcp.pop %v1420
      %v1447 = vmul.f32 1.0, %v1446
      %v1448 = vrcp.pop %v1421
      %v1449 = vmul.f32 1.0, %v1448
      %v1450 = vrcp.pop %v1422
      %v1451 = vmul.f32 1.0, %v1450
      %v1452 = vrcp.pop %v1423
      %v1453 = vmul.f32 1.0, %v1452
      %v1454 = vrcp.pop %v1424
      %v1455 = vmul.f32 1.0, %v1454
      %v1456 = vrcp.pop %v1425
      %v1457 = vmul.f32 1.0, %v1456
      %v1458 = vmul.f32 %v1061, %v1427
      %v1459 = vmul.f32 %v1062, %v1429
      %v1460 = vmul.f32 %v1063, %v1431
      %v1461 = vmul.f32 %v1064, %v1433
      %v1462 = vmul.f32 %v1065, %v1435
      %v1463 = vmul.f32 %v1066, %v1437
      %v1464 = vmul.f32 %v1067, %v1439
      %v1465 = vmul.f32 %v1068, %v1441
      %v1466 = vmul.f32 %v1069, %v1443
      %v1467 = vmul.f32 %v1070, %v1445
      %v1468 = vmul.f32 %v1071, %v1447
      %v1469 = vmul.f32 %v1072, %v1449
      %v1470 = vmul.f32 %v1073, %v1451
      %v1471 = vmul.f32 %v1074, %v1453
      %v1472 = vmul.f32 %v1075, %v1455
      %v1473 = vmul.f32 %v1076, %v1457
      %v1474 = vpack.c.bf16 %v1460, %v1458
      %v1475 = vpack.c.bf16 %v1461, %v1459
      %v1476 = vpack.c.bf16 %v1464, %v1462
      %v1477 = vpack.c.bf16 %v1465, %v1463
      %v1478 = vpack.c.bf16 %v1468, %v1466
      %v1479 = vpack.c.bf16 %v1469, %v1467
      %v1480 = vpack.c.bf16 %v1472, %v1470
      %v1481 = vpack.c.bf16 %v1473, %v1471
      %v1498 = vunpack.c.l.b16 %v1077
      %v1499 = vunpack.c.l.b16 %v1078
      %v1500 = vunpack.c.l.b16 %v1474
      %v1501 = vunpack.c.l.b16 %v1475
      %v1502 = vunpack.c.h.b16 %v1077
      %v1503 = vunpack.c.h.b16 %v1078
      %v1504 = vunpack.c.h.b16 %v1474
      %v1505 = vunpack.c.h.b16 %v1475
      %v1506 = vunpack.c.l.b16 %v1079
      %v1507 = vunpack.c.l.b16 %v1080
      %v1508 = vunpack.c.l.b16 %v1476
      %v1509 = vunpack.c.l.b16 %v1477
      %v1510 = vunpack.c.h.b16 %v1079
      %v1511 = vunpack.c.h.b16 %v1080
      %v1512 = vunpack.c.h.b16 %v1476
      %v1513 = vunpack.c.h.b16 %v1477
      %v1514 = vunpack.c.l.b16 %v1081
      %v1515 = vunpack.c.l.b16 %v1082
      %v1516 = vunpack.c.l.b16 %v1478
      %v1517 = vunpack.c.l.b16 %v1479
      %v1518 = vunpack.c.h.b16 %v1081
      %v1519 = vunpack.c.h.b16 %v1082
      %v1520 = vunpack.c.h.b16 %v1478
      %v1521 = vunpack.c.h.b16 %v1479
      %v1522 = vunpack.c.l.b16 %v1083
      %v1523 = vunpack.c.l.b16 %v1084
      %v1524 = vunpack.c.l.b16 %v1480
      %v1525 = vunpack.c.l.b16 %v1481
      %v1526 = vunpack.c.h.b16 %v1083
      %v1527 = vunpack.c.h.b16 %v1084
      %v1528 = vunpack.c.h.b16 %v1480
      %v1529 = vunpack.c.h.b16 %v1481
      %v1530 = vpack.c.b16 %v1499, %v1498
      %v1531 = vpack.c.b16 %v1501, %v1500
      %v1532 = vpack.c.b16 %v1503, %v1502
      %v1533 = vpack.c.b16 %v1505, %v1504
      %v1534 = vpack.c.b16 %v1507, %v1506
      %v1535 = vpack.c.b16 %v1509, %v1508
      %v1536 = vpack.c.b16 %v1511, %v1510
      %v1537 = vpack.c.b16 %v1513, %v1512
      %v1538 = vpack.c.b16 %v1515, %v1514
      %v1539 = vpack.c.b16 %v1517, %v1516
      %v1540 = vpack.c.b16 %v1519, %v1518
      %v1541 = vpack.c.b16 %v1521, %v1520
      %v1542 = vpack.c.b16 %v1523, %v1522
      %v1543 = vpack.c.b16 %v1525, %v1524
      %v1544 = vpack.c.b16 %v1527, %v1526
      %v1545 = vpack.c.b16 %v1529, %v1528
      %1562 = vst [vmem:[%s545] sm:$0xff] %v1530
      %1563 = vst [vmem:[%s545 + $0x8] sm:$0xff] %v1531
      %1564 = vst [vmem:[%s545 + $0x10] sm:$0xff] %v1532
      %1565 = vst [vmem:[%s545 + $0x18] sm:$0xff] %v1533
      %1566 = vst [vmem:[%s545 + $0x20] sm:$0xff] %v1534
      %1567 = vst [vmem:[%s545 + $0x28] sm:$0xff] %v1535
      %1568 = vst [vmem:[%s545 + $0x30] sm:$0xff] %v1536
      %1569 = vst [vmem:[%s545 + $0x38] sm:$0xff] %v1537
      %1570 = vst [vmem:[%s545 + $0x40] sm:$0xff] %v1538
      %1571 = vst [vmem:[%s545 + $0x48] sm:$0xff] %v1539
      %1572 = vst [vmem:[%s545 + $0x50] sm:$0xff] %v1540
      %1573 = vst [vmem:[%s545 + $0x58] sm:$0xff] %v1541
      %1574 = vst [vmem:[%s545 + $0x60] sm:$0xff] %v1542
      %1575 = vst [vmem:[%s545 + $0x68] sm:$0xff] %v1543
      %1576 = vst [vmem:[%s545 + $0x70] sm:$0xff] %v1544
      %1577 = vst [vmem:[%s545 + $0x78] sm:$0xff] %v1545
      %v1578 = vadd.f32 %v868, %v869
      %v1579 = vadd.f32 %v1578, %v870
      %v1580 = vadd.f32 %v1579, %v871
      %v1581 = vadd.f32 %v1580, %v872
      %v1582 = vadd.f32 %v1581, %v873
      %v1583 = vadd.f32 %v1582, %v874
      %v1584 = vadd.f32 %v1583, %v875
      %v1585 = vrot.slane %v1584, 4
      %v1586 = vadd.f32 %v1584, %v1585
      %v1587 = vrot.slane %v1586, 2
      %v1588 = vadd.f32 %v1586, %v1587
      %v1589 = vrot.slane %v1588, 1
      %v1590 = vadd.f32 %v1588, %v1589
      %v1591 = vrcp.pop 64.0
      %v1592 = vmul.f32 %v1590, %v1591
      %v1593 = vadd.f32 %v1061, %v1063
      %v1594 = vadd.f32 %v1593, %v1065
      %v1595 = vadd.f32 %v1594, %v1067
      %v1596 = vadd.f32 %v1595, %v1069
      %v1597 = vadd.f32 %v1596, %v1071
      %v1598 = vadd.f32 %v1597, %v1073
      %v1599 = vadd.f32 %v1598, %v1075
      %v1600 = vrot.slane %v1599, 4
      %v1601 = vadd.f32 %v1599, %v1600
      %v1602 = vrot.slane %v1601, 2
      %v1603 = vadd.f32 %v1601, %v1602
      %v1604 = vrot.slane %v1603, 1
      %v1605 = vadd.f32 %v1603, %v1604
      %v1606 = vadd.f32 %v1062, %v1064
      %v1607 = vadd.f32 %v1606, %v1066
      %v1608 = vadd.f32 %v1607, %v1068
      %v1609 = vadd.f32 %v1608, %v1070
      %v1610 = vadd.f32 %v1609, %v1072
      %v1611 = vadd.f32 %v1610, %v1074
      %v1612 = vadd.f32 %v1611, %v1076
      %v1613 = vrot.slane %v1612, 4
      %v1614 = vadd.f32 %v1612, %v1613
      %v1615 = vrot.slane %v1614, 2
      %v1616 = vadd.f32 %v1614, %v1615
      %v1617 = vrot.slane %v1616, 1
      %v1618 = vadd.f32 %v1616, %v1617
      %v1619 = vmul.f32 %v1605, %v1591
      %v1620 = vmul.f32 %v1618, %v1591
      %v1621 = vadd.f32 %v1458, %v1460
      %v1622 = vadd.f32 %v1621, %v1462
      %v1623 = vadd.f32 %v1622, %v1464
      %v1624 = vadd.f32 %v1623, %v1466
      %v1625 = vadd.f32 %v1624, %v1468
      %v1626 = vadd.f32 %v1625, %v1470
      %v1627 = vadd.f32 %v1626, %v1472
      %v1628 = vrot.slane %v1627, 4
      %v1629 = vadd.f32 %v1627, %v1628
      %v1630 = vrot.slane %v1629, 2
      %v1631 = vadd.f32 %v1629, %v1630
      %v1632 = vrot.slane %v1631, 1
      %v1633 = vadd.f32 %v1631, %v1632
      %v1634 = vadd.f32 %v1459, %v1461
      %v1635 = vadd.f32 %v1634, %v1463
      %v1636 = vadd.f32 %v1635, %v1465
      %v1637 = vadd.f32 %v1636, %v1467
      %v1638 = vadd.f32 %v1637, %v1469
      %v1639 = vadd.f32 %v1638, %v1471
      %v1640 = vadd.f32 %v1639, %v1473
      %v1641 = vrot.slane %v1640, 4
      %v1642 = vadd.f32 %v1640, %v1641
      %v1643 = vrot.slane %v1642, 2
      %v1644 = vadd.f32 %v1642, %v1643
      %v1645 = vrot.slane %v1644, 1
      %v1646 = vadd.f32 %v1644, %v1645
      %v1647 = vmul.f32 %v1633, %v1591
      %v1648 = vmul.f32 %v1646, %v1591
      %v1654 = vcombine.low %v1592, %v1619
      %v1655 = vcombine.low %v1620, %v1647
      %v1657 = vunpack.c.l.s4 1966171168
      %v1658 = vunpack.c.0.s8 %v1657
      %v1659 = vlaneseq
      %v1660 = vshrl.u32 %v1659, 7
      %v1661 = vsub.s32 %v1658, %v1660
      %v1662 = vrot.slane %v1654, %v1661
      %v1664 = vunpack.c.l.s4 1966171168
      %v1665 = vunpack.c.0.s8 %v1664
      %v1666 = vlaneseq
      %v1667 = vshrl.u32 %v1666, 7
      %v1668 = vsub.s32 %v1665, %v1667
      %v1669 = vrot.slane %v1655, %v1668
      %v1671 = vunpack.c.l.s4 1966171168
      %v1672 = vunpack.c.0.s8 %v1671
      %v1673 = vlaneseq
      %v1674 = vshrl.u32 %v1673, 7
      %v1675 = vsub.s32 %v1672, %v1674
      %v1676 = vrot.slane %v1648, %v1675
      %v1677 = vcombine.low %v1662, %v1669
      %v1679 = vunpack.c.l.s4 1966171168
      %v1680 = vunpack.c.0.s8 %v1679
      %v1681 = vlaneseq
      %v1682 = vshrl.u32 %v1681, 7
      %v1683 = vsub.s32 %v1680, %v1682
      %v1684 = vrot.slane %v1677, %v1683
      %v1686 = vunpack.c.l.s4 1966171168
      %v1687 = vunpack.c.0.s8 %v1686
      %v1688 = vlaneseq
      %v1689 = vshrl.u32 %v1688, 7
      %v1690 = vsub.s32 %v1687, %v1689
      %v1691 = vrot.slane %v1676, %v1690
      %v1692 = vcombine.low %v1684, %v1691
      %v1694 = vlaneseq
      %vm1695 = vcmp.ge.s32.totalorder %v1694, 0
      %vm1696 = vcmp.lt.s32.totalorder %v1694, 640
      %vm1697 = vmand %vm1695, %vm1696
      %s1698 = sshra.s32 %s27, 1
      %s1699 = sand.u32 %s27, 1
      %s1700 = sshra.s32 %s27, 1
      %s1701 = sand.u32 %s27, 1
      %s1702 = smul.u32 %s1698, 5
      %s1703 = smul.u32 %s1702, 2
      %s1704 = sadd.s32 %s1703, %s1701
      %s1705 = scalar_lea.vmem %s550, %s1704
      %1706 = vst.msk [vmem:[%s1705] ss:$2 sm:$0x1f] %vm1697, %v1692
      %p1707 = scmp.lt.s32.totalorder %s26, 1
      %s1708 = scalar_select %p1707, %s26, 1
      %p1709 = scmp.lt.s32.totalorder %s27, 1
      %s1710 = scalar_select %p1709, %s27, 1
      %s1711 = smul.addr %s1710, 32
      %s1712 = smul.addr %s1708, 64
      %s1713 = sadd.s32 %s1711, %s1712
      %s1714 = smul.addr %s1713, 4
      %s1715 = scalar_lea.vmem %s9, %s1714
      %p1716 = scmp.lt.s32.totalorder %s26, 1
      %s1717 = scalar_select %p1716, %s26, 1
      %s1718 = smul.addr %s1717, 5
      %s1719 = smul.addr %s1718, 2
      %s1720 = scalar_lea.vmem %s10, %s1719
      // Predicated region
      $region57: #{feat_extractor_forward.1} parent=55 // pred_check
        %p1721 = pneg %p290
      $region58: #{feat_extractor_forward.1} parent=55 // pred_check_branch
        %1723 = sbr.rel (%p1721) target = $region60
      $region59: #{feat_extractor_forward.1} parent=55 // pred_region
        _
      $region60: #{feat_extractor_forward.1} parent=55 // pred_fallthru
        _
      // Predicated region
      $region61: #{feat_extractor_forward.1} parent=55 // pred_check
        %p1724 = pneg %p316
      $region62: #{feat_extractor_forward.1} parent=55 // pred_check_branch
        %1726 = sbr.rel (%p1724) target = $region64
      $region63: #{feat_extractor_forward.1} parent=55 // pred_region
        _
      $region64: #{feat_extractor_forward.1} parent=55 // pred_fallthru
        _
    $region56: #{feat_extractor_forward.1} parent=5 // pred_fallthru
      _
    %p1727 = scmp.le.s32.totalorder 2, %s17
    // Predicated region
    $region65: #{feat_extractor_forward.1} parent=5 // pred_check
      %p1728 = pneg %p1727
    $region66: #{feat_extractor_forward.1} parent=5 // pred_check_branch
      %1730 = sbr.rel (%p1728) target = $region68
    $region67: #{feat_extractor_forward.1} parent=5 // pred_region
      %s1731 = ssub.s32 %s17, 2
      // Predicated region
      $region69: #{feat_extractor_forward.1} parent=67 // pred_check
        %p1732 = pneg %p296
      $region70: #{feat_extractor_forward.1} parent=67 // pred_check_branch
        %1734 = sbr.rel (%p1732) target = $region72
      $region71: #{feat_extractor_forward.1} parent=67 // pred_region
        %p1735 = scmp.lt.s32.totalorder %s28, 1
        %s1736 = scalar_select %p1735, %s28, 1
        %p1737 = scmp.lt.s32.totalorder %s29, 1
        %s1738 = scalar_select %p1737, %s29, 1
        %s1739 = smul.addr %s1738, 32
        %s1740 = smul.addr %s1736, 64
        %s1741 = sadd.s32 %s1739, %s1740
        %s1742 = smul.addr %s1741, 4
        %s1743 = scalar_lea.vmem %s9, %s1742
      $region72: #{feat_extractor_forward.1} parent=67 // pred_fallthru
        _
      // Predicated region
      $region73: #{feat_extractor_forward.1} parent=67 // pred_check
        %p1744 = pneg %p322
      $region74: #{feat_extractor_forward.1} parent=67 // pred_check_branch
        %1746 = sbr.rel (%p1744) target = $region76
      $region75: #{feat_extractor_forward.1} parent=67 // pred_region
        %p1747 = scmp.lt.s32.totalorder %s28, 1
        %s1748 = scalar_select %p1747, %s28, 1
        %s1749 = smul.addr %s1748, 5
        %s1750 = smul.addr %s1749, 2
        %s1751 = scalar_lea.vmem %s10, %s1750
      $region76: #{feat_extractor_forward.1} parent=67 // pred_fallthru
        _
    $region68: #{feat_extractor_forward.1} parent=5 // pred_fallthru
      _
  $region6: #{feat_extractor_forward.1} parent=0 // loop_footer
    %s21 = sadd.s32 1, %s17
  $region7: #{feat_extractor_forward.1} parent=0 // loop_footer_branch
    %16 = sbr.rel target = $region3
  $region8: #{feat_extractor_forward.1} parent=0 // loop_exit
    _

</llo_original>
